<compile_context>
chip_gen: v7x
topology: tpu7x:2x2x1
jax: 0.10.0
libtpu: 0.0.40
codegen_flags: <defaults>
</compile_context>

<pallas_src>
import functools
import math

import jax
import jax.numpy as jnp
from jax.experimental import pallas as pl
from jax.experimental.pallas import tpu as pltpu

# ---- conf_attn_down (key_ratio must be 1 per the module's __init__ check) ----
CONF_ATTN_DOWN = dict(
    key_ratio=1,
    value_ratio=1,
    num_heads=2,
    dropout_rate=0.0,
    use_softmax=True,
    use_bias=True,
)
BN_EPS = 1e-5


def _down_gto_kernel(x_ref, xds_ref, bn_ref, wqs_ref, wk_ref, wv_ref, wqp_ref,
                     wo_ref, bkq_ref, bv_ref, bout_ref, out_ref,
                     q_sc, m_sc, l_sc, acc_sc, *,
                     num_heads, dk, dv, bt, sq_t, kv_t):
    """One (batch-block, q-tile, kv-tile) grid step.

    x_ref:    (Bt, KV_t, Cin) bf16  full-resolution tokens (current KV tile)
    xds_ref:  (Bt, Sq_t, Cin) bf16  stride-2 downsampled tokens (query tile)
    bn_ref:   (4, Cin) f32          rows = [gamma, beta, running_mean, running_var]
    wqs_ref:  (Cin, Dk)   bf16      wq * 1/sqrt(dk_h)   (attention queries)
    wk_ref:   (Cin, Dk)   bf16
    wv_ref:   (Cin, Dv)   bf16
    wqp_ref:  (Cin, Dpad) bf16      wq zero-padded      (residual queries)
    wo_ref:   (Dv, Dpad)  bf16
    bkq_ref:  (2, Dk) f32           rows = [bk, bq * 1/sqrt(dk_h)]
    bv_ref:   (1, Dv) f32
    bout_ref: (1, Dpad) f32         bq_pad + bo_pad (residual + output bias)
    out_ref:  (Bt, Sq_t, Dpad) bf16 lane-dense; padded cols are exact zeros
    q_sc:     (Bt, Sq_t, Dk) bf16   scaled queries (persist across KV tiles)
    m_sc/l_sc:(num_heads, Bt, Sq_t, 1) f32   online-softmax running max / sum
    acc_sc:   (Bt, Sq_t, Dv) f32    unnormalized PV accumulator (heads = col slices)
    """
    cin = x_ref.shape[2]
    dpad = out_ref.shape[2]
    dk_h = dk // num_heads
    dv_h = dv // num_heads
    kv = pl.program_id(2)
    nk = pl.num_programs(2)

    # ---- BatchNorm (inference) scale/shift, f32 on the VPU (hoisted) --------
    gamma = bn_ref[0:1, :]
    beta = bn_ref[1:2, :]
    mean = bn_ref[2:3, :]
    var = bn_ref[3:4, :]
    scale = gamma * jax.lax.rsqrt(var + BN_EPS)          # (1, Cin)
    shift = beta - mean * scale                          # (1, Cin)

    def bn_relu_bf16(tok):                               # (b, s, Cin) bf16 -> (b*s, Cin) bf16
        rows = tok.shape[0] * tok.shape[1]
        t = tok.reshape(rows, cin).astype(jnp.float32)
        return jnp.maximum(t * scale + shift, 0.0).astype(jnp.bfloat16)

    # ---- first KV tile: queries + reset online-softmax state ---------------
    @pl.when(kv == 0)
    def _():
        xq = bn_relu_bf16(xds_ref[...])                               # (R, Cin)
        q = jnp.dot(xq, wqs_ref[...], preferred_element_type=jnp.float32)
        q = q + bkq_ref[1:2, :]                                       # scaled bq
        q_sc[...] = q.reshape(bt, sq_t, dk).astype(jnp.bfloat16)
        m_sc[...] = jnp.full(m_sc.shape, -jnp.inf, dtype=m_sc.dtype)
        l_sc[...] = jnp.zeros(l_sc.shape, dtype=l_sc.dtype)
        acc_sc[...] = jnp.zeros(acc_sc.shape, dtype=acc_sc.dtype)

    # ---- every KV tile: BN+ReLU -> K/V projections -> online softmax -------
    xk = bn_relu_bf16(x_ref[...])                                     # (Rk, Cin)
    k = jnp.dot(xk, wk_ref[...], preferred_element_type=jnp.float32) + bkq_ref[0:1, :]
    v = jnp.dot(xk, wv_ref[...], preferred_element_type=jnp.float32) + bv_ref[0:1, :]
    k3 = k.reshape(bt, kv_t, dk).astype(jnp.bfloat16)
    v3 = v.reshape(bt, kv_t, dv).astype(jnp.bfloat16)
    q3 = q_sc[...]                                                    # (Bt, Sq_t, Dk) bf16

    for h in range(num_heads):                                        # static (num_heads == 2)
        qh = q3[:, :, h * dk_h:(h + 1) * dk_h]                        # (Bt, Sq_t, dk_h)
        kh = k3[:, :, h * dk_h:(h + 1) * dk_h]                        # (Bt, KV_t, dk_h)
        vh = v3[:, :, h * dv_h:(h + 1) * dv_h]                        # (Bt, KV_t, dv_h)
        # batched dot_general contracting last dims (no kh.T materialization)
        s = jnp.einsum('bqd,bkd->bqk', qh, kh,
                       preferred_element_type=jnp.float32)            # (Bt, Sq_t, KV_t) f32
        m_prev = m_sc[h]                                              # (Bt, Sq_t, 1)
        m_new = jnp.maximum(m_prev, jnp.max(s, axis=-1, keepdims=True))
        alpha = jnp.exp(m_prev - m_new)
        p = jnp.exp(s - m_new)                                        # f32 (v5e-safe EUP math)
        l_sc[h] = alpha * l_sc[h] + jnp.sum(p, axis=-1, keepdims=True)
        m_sc[h] = m_new
        pv = jnp.einsum('bqk,bkd->bqd', p.astype(jnp.bfloat16), vh,
                        preferred_element_type=jnp.float32)           # (Bt, Sq_t, dv_h)
        acc_sc[:, :, h * dv_h:(h + 1) * dv_h] = (
            alpha * acc_sc[:, :, h * dv_h:(h + 1) * dv_h] + pv)

    # ---- last KV tile: normalize, output projection, residual, store -------
    @pl.when(kv == nk - 1)
    def _():
        for h in range(num_heads):
            inv_l = pl.reciprocal(l_sc[h], approx=True)               # EUP slot
            acc_sc[:, :, h * dv_h:(h + 1) * dv_h] = (
                acc_sc[:, :, h * dv_h:(h + 1) * dv_h] * inv_l)
        attn = acc_sc[...].reshape(bt * sq_t, dv).astype(jnp.bfloat16)
        xq = bn_relu_bf16(xds_ref[...])                               # tiny recompute
        q_res = jnp.dot(xq, wqp_ref[...], preferred_element_type=jnp.float32)
        out = (jnp.dot(attn, wo_ref[...], preferred_element_type=jnp.float32)
               + bout_ref[0:1, :] + q_res)                            # (R, Dpad) f32
        out_ref[...] = out.reshape(bt, sq_t, dpad).astype(out_ref.dtype)


def _pick_tile(total, cap):
    """Largest divisor of `total` that is <= cap and a multiple of 8 (else total)."""
    if total <= cap:
        return total
    for t in range(cap, 7, -1):
        if total % t == 0 and t % 8 == 0:
            return t
    return total


def _pick_bt(n, nq):
    """Largest batch block <= 8 dividing n, keeping >= 2 parallel blocks (v7x 2 TCs)."""
    for bt in (8, 4, 2, 1):
        if n % bt == 0 and (n // bt) * nq >= 2:
            return bt
    return math.gcd(n, 8)


def down_gto_v2(x_nchw, params, *, num_heads):
    """Wrapper: NCHW f32 in, NCHW f32 out (spatially downsampled by 2)."""
    N, Cin, H, W = x_nchw.shape
    S = H * W
    Hq, Wq = H // 2, W // 2
    Sq = Hq * Wq
    Dk = params["wq"].shape[1]
    Dv = params["wv"].shape[1]
    Dout = params["wo"].shape[1]
    assert Dk == Dout  # key_ratio == 1 (enforced by the torch module __init__)
    Dpad = ((max(Dout, 1) + 127) // 128) * 128
    dk_h = Dk // num_heads
    inv_sqrt = 1.0 / math.sqrt(float(dk_h))

    # Token layouts in bf16 (halves input DMA bytes); BN/softmax math stays f32.
    x_tok = jnp.transpose(x_nchw, (0, 2, 3, 1)).reshape(N, S, Cin).astype(jnp.bfloat16)
    xds_tok = jnp.transpose(x_nchw[:, :, ::2, ::2],
                            (0, 2, 3, 1)).reshape(N, Sq, Cin).astype(jnp.bfloat16)

    bn = jnp.stack([params["gamma"], params["beta"],
                    params["running_mean"], params["running_var"]], axis=0)  # (4, Cin) f32

    def pad_cols(w, width):
        return jnp.pad(w, ((0, 0), (0, width - w.shape[-1])))

    # 1/sqrt(dk_h) folded into the attention-Q weights/bias; residual-Q weights
    # zero-padded to Dpad (padded output columns stay exactly zero).
    wq_s = (params["wq"] * inv_sqrt).astype(jnp.bfloat16)            # (Cin, Dk)
    wq_p = pad_cols(params["wq"], Dpad).astype(jnp.bfloat16)         # (Cin, Dpad)
    wk_b = params["wk"].astype(jnp.bfloat16)                         # (Cin, Dk)
    wv_b = params["wv"].astype(jnp.bfloat16)                         # (Cin, Dv)
    wo_p = pad_cols(params["wo"], Dpad).astype(jnp.bfloat16)         # (Dv, Dpad)
    b_kq = jnp.stack([params["bk"], params["bq"] * inv_sqrt], axis=0)  # (2, Dk) f32
    b_v = params["bv"].reshape(1, Dv)                                  # (1, Dv) f32
    b_out = (jnp.pad(params["bq"], (0, Dpad - Dk))
             + jnp.pad(params["bo"], (0, Dpad - Dout))).reshape(1, Dpad)  # (1, Dpad) f32

    # ---- tiling: two parallel axes + streamed KV axis -----------------------
    Sq_t = _pick_tile(Sq, 256)     # q-tile (parallel)
    KV_t = _pick_tile(S, 128)      # kv-tile (arbitrary, streamed, lane-wide scores)
    nq = Sq // Sq_t
    nk = S // KV_t
    Bt = _pick_bt(N, nq)
    nb = N // Bt

    # ---- explicit VMEM budget (v7x: 64 MiB physical, 32 MiB default scoped) --
    def _bytes(shape, b):
        n = 1
        for d in shape:
            n *= d
        return n * b

    est = (
        2 * (_bytes((Bt, KV_t, Cin), 2) + _bytes((Bt, Sq_t, Cin), 2)
             + _bytes((Bt, Sq_t, Dpad), 2))                       # double-buffered blocks
        + _bytes((Cin, 2 * Dk + Dv + Dpad), 2) + _bytes((Dv, Dpad), 2)   # weights
        + _bytes((Bt, Sq_t, Dk), 2) + _bytes((Bt, Sq_t, Dv), 4)          # q / acc scratch
        + 2 * num_heads * Bt * Sq_t * 128 * 4                            # m/l (lane-padded)
        + 4 * _bytes((Bt, Sq_t, KV_t), 4)                                # score/exp temps
        + 2 * _bytes((Bt, max(Sq_t, KV_t), max(Cin, Dpad)), 4)           # projection temps
    )
    vmem_limit = int(min(max(2 * est, 16 * 2 ** 20), 48 * 2 ** 20))

    kernel = functools.partial(_down_gto_kernel, num_heads=num_heads,
                               dk=Dk, dv=Dv, bt=Bt, sq_t=Sq_t, kv_t=KV_t)

    out_tok = pl.pallas_call(
        kernel,
        out_shape=jax.ShapeDtypeStruct((N, Sq, Dpad), jnp.bfloat16),
        grid_spec=pltpu.PrefetchScalarGridSpec(
            num_scalar_prefetch=0,
            grid=(nb, nq, nk),
            in_specs=[
                pl.BlockSpec((Bt, KV_t, Cin), lambda b, q, k: (b, k, 0)),   # x (KV stream)
                pl.BlockSpec((Bt, Sq_t, Cin), lambda b, q, k: (b, q, 0)),   # xds (queries)
                pl.BlockSpec((4, Cin), lambda b, q, k: (0, 0)),             # bn stats
                pl.BlockSpec((Cin, Dk), lambda b, q, k: (0, 0)),            # wq (scaled)
                pl.BlockSpec((Cin, Dk), lambda b, q, k: (0, 0)),            # wk
                pl.BlockSpec((Cin, Dv), lambda b, q, k: (0, 0)),            # wv
                pl.BlockSpec((Cin, Dpad), lambda b, q, k: (0, 0)),          # wq (padded)
                pl.BlockSpec((Dv, Dpad), lambda b, q, k: (0, 0)),           # wo
                pl.BlockSpec((2, Dk), lambda b, q, k: (0, 0)),              # [bk, bq*s]
                pl.BlockSpec((1, Dv), lambda b, q, k: (0, 0)),              # bv
                pl.BlockSpec((1, Dpad), lambda b, q, k: (0, 0)),            # bq+bo padded
            ],
            out_specs=pl.BlockSpec((Bt, Sq_t, Dpad), lambda b, q, k: (b, q, 0)),
            scratch_shapes=[
                pltpu.VMEM((Bt, Sq_t, Dk), jnp.bfloat16),                   # q_sc
                pltpu.VMEM((num_heads, Bt, Sq_t, 1), jnp.float32),          # m_sc
                pltpu.VMEM((num_heads, Bt, Sq_t, 1), jnp.float32),          # l_sc
                pltpu.VMEM((Bt, Sq_t, Dv), jnp.float32),                    # acc_sc
            ],
        ),
        compiler_params=pltpu.CompilerParams(
            dimension_semantics=("parallel", "parallel", "arbitrary"),
            vmem_limit_bytes=vmem_limit,
        ),
    )(x_tok, xds_tok, bn, wq_s, wk_b, wv_b, wq_p, wo_p, b_kq, b_v, b_out)

    out = out_tok[:, :, :Dout].astype(jnp.float32)
    return jnp.transpose(out.reshape(N, Hq, Wq, Dout), (0, 3, 1, 2))


def down_gto_v2_reference(x_nchw, params, *, num_heads):
    """Pure-JAX f32 reference of the same forward pass (for validation)."""
    N, Cin, H, W = x_nchw.shape
    S, Sq = H * W, (H // 2) * (W // 2)
    Dk = params["wq"].shape[1]
    Dv = params["wv"].shape[1]
    Dout = params["wo"].shape[1]

    scale = params["gamma"] * jax.lax.rsqrt(params["running_var"] + BN_EPS)
    shift = params["beta"] - params["running_mean"] * scale

    x_tok = jnp.transpose(x_nchw, (0, 2, 3, 1)).reshape(N, S, Cin)
    xds_tok = jnp.transpose(x_nchw[:, :, ::2, ::2], (0, 2, 3, 1)).reshape(N, Sq, Cin)
    x_bn = jnp.maximum(x_tok * scale + shift, 0.0)
    xds_bn = jnp.maximum(xds_tok * scale + shift, 0.0)

    q = xds_bn @ params["wq"] + params["bq"]   # (N, Sq, Dk)
    k = x_bn @ params["wk"] + params["bk"]     # (N, S, Dk)
    v = x_bn @ params["wv"] + params["bv"]     # (N, S, Dv)

    dk_h = Dk // num_heads
    dv_h = Dv // num_heads
    outs = []
    for h in range(num_heads):
        qh = q[..., h * dk_h:(h + 1) * dk_h]
        kh = k[..., h * dk_h:(h + 1) * dk_h]
        vh = v[..., h * dv_h:(h + 1) * dv_h]
        s = jnp.einsum('bqd,bkd->bqk', qh, kh) / jnp.sqrt(float(dk_h))
        p = jax.nn.softmax(s, axis=-1)
        outs.append(jnp.einsum('bqk,bkd->bqd', p, vh))
    attn = jnp.concatenate(outs, axis=-1) @ params["wo"] + params["bo"]
    out = attn + q                                                 # residual
    return jnp.transpose(out.reshape(N, H // 2, W // 2, Dout), (0, 3, 1, 2))


def make_params(key, in_channels, output_filters, conf):
    """Deterministic synthetic parameter init (shapes from the module __init__)."""
    kd = output_filters // conf["key_ratio"]    # key/query dim (== output_filters)
    vd = output_filters // conf["value_ratio"]  # value dim
    ks = jax.random.split(key, 8)
    f32 = jnp.float32
    return dict(
        gamma=1.0 + 0.1 * jax.random.normal(ks[0], (in_channels,), f32),
        beta=0.1 * jax.random.normal(ks[1], (in_channels,), f32),
        running_mean=0.1 * jax.random.normal(ks[2], (in_channels,), f32),
        running_var=1.0 + 0.1 * jax.random.uniform(ks[3], (in_channels,), f32),
        wq=0.1 * jax.random.normal(ks[4], (in_channels, kd), f32),
        wk=0.1 * jax.random.normal(ks[5], (in_channels, kd), f32),
        wv=0.1 * jax.random.normal(ks[6], (in_channels, vd), f32),
        wo=0.1 * jax.random.normal(ks[7], (vd, output_filters), f32),
        bq=jnp.zeros((kd,), f32),
        bk=jnp.zeros((kd,), f32),
        bv=jnp.zeros((vd,), f32),
        bo=jnp.zeros((output_filters,), f32),
    )


if __name__ == "__main__":
    key = jax.random.PRNGKey(0)
    N, Cin, H, W = 2, 4, 16, 16
    output_filters = 32

    k_x, k_p = jax.random.split(key)
    x = jax.random.normal(k_x, (N, Cin, H, W), jnp.float32)
    params = make_params(k_p, Cin, output_filters, CONF_ATTN_DOWN)

    out = down_gto_v2(x, params, num_heads=CONF_ATTN_DOWN["num_heads"])
    out = jax.block_until_ready(out)

    assert out.shape == (N, output_filters, H // 2, W // 2), out.shape
    assert bool(jnp.all(jnp.isfinite(out)))

    # Validate against the pure-JAX f32 reference (kernel uses bf16 activations,
    # bf16 MXU inputs / f32 accumulation, bf16 output -> loose tolerance).
    ref = down_gto_v2_reference(x, params, num_heads=CONF_ATTN_DOWN["num_heads"])
    max_err = float(jnp.max(jnp.abs(out - ref)))
    assert max_err < 5e-2, f"max abs error vs reference: {max_err}"

    print("KERNEL_OK")
</pallas_src>

<mosaic_0001>
module attributes {stable_mosaic.version = 11 : i64} {
  func.func @_down_gto_kernel(%arg0: i32, %arg1: i32, %arg2: i32, %arg3: memref<1x128x4xbf16, #tpu.memory_space<vmem>>, %arg4: memref<1x64x4xbf16, #tpu.memory_space<vmem>>, %arg5: memref<4x4xf32, #tpu.memory_space<vmem>>, %arg6: memref<4x32xbf16, #tpu.memory_space<vmem>>, %arg7: memref<4x32xbf16, #tpu.memory_space<vmem>>, %arg8: memref<4x32xbf16, #tpu.memory_space<vmem>>, %arg9: memref<4x128xbf16, #tpu.memory_space<vmem>>, %arg10: memref<32x128xbf16, #tpu.memory_space<vmem>>, %arg11: memref<2x32xf32, #tpu.memory_space<vmem>>, %arg12: memref<1x32xf32, #tpu.memory_space<vmem>>, %arg13: memref<1x128xf32, #tpu.memory_space<vmem>>, %arg14: memref<1x64x128xbf16, #tpu.memory_space<vmem>>, %arg15: memref<1x64x32xbf16, #tpu.memory_space<vmem>>, %arg16: memref<2x1x64x1xf32, #tpu.memory_space<vmem>>, %arg17: memref<2x1x64x1xf32, #tpu.memory_space<vmem>>, %arg18: memref<1x64x32xf32, #tpu.memory_space<vmem>>) attributes {dimension_semantics = [#tpu.dimension_semantics<parallel>, #tpu.dimension_semantics<parallel>, #tpu.dimension_semantics<arbitrary>], iteration_bounds = array<i64: 2, 1, 2>, scalar_prefetch = 0 : i64, scratch_operands = 4 : i64, tpu.core_type = #tpu.core_type<tc>, window_params = [{transform_indices = @transform_0, window_bounds = array<i64: 1, 128, 4>}, {transform_indices = @transform_1, window_bounds = array<i64: 1, 64, 4>}, {pipeline_mode = #tpu.pipeline_mode<synchronous>, transform_indices = @transform_2, window_bounds = array<i64: 4, 4>}, {pipeline_mode = #tpu.pipeline_mode<synchronous>, transform_indices = @transform_3, window_bounds = array<i64: 4, 32>}, {pipeline_mode = #tpu.pipeline_mode<synchronous>, transform_indices = @transform_4, window_bounds = array<i64: 4, 32>}, {pipeline_mode = #tpu.pipeline_mode<synchronous>, transform_indices = @transform_5, window_bounds = array<i64: 4, 32>}, {pipeline_mode = #tpu.pipeline_mode<synchronous>, transform_indices = @transform_6, window_bounds = array<i64: 4, 128>}, {pipeline_mode = #tpu.pipeline_mode<synchronous>, transform_indices = @transform_7, window_bounds = array<i64: 32, 128>}, {pipeline_mode = #tpu.pipeline_mode<synchronous>, transform_indices = @transform_8, window_bounds = array<i64: 2, 32>}, {pipeline_mode = #tpu.pipeline_mode<synchronous>, transform_indices = @transform_9, window_bounds = array<i64: 1, 32>}, {pipeline_mode = #tpu.pipeline_mode<synchronous>, transform_indices = @transform_10, window_bounds = array<i64: 1, 128>}, {transform_indices = @transform_11, window_bounds = array<i64: 1, 64, 128>}]} {
    %c0 = arith.constant 0 : index
    %c0_0 = arith.constant 0 : index
    %0 = vector.load %arg5[%c0, %c0_0] : memref<4x4xf32, #tpu.memory_space<vmem>>, vector<1x4xf32>
    %c1 = arith.constant 1 : index
    %c0_1 = arith.constant 0 : index
    %1 = vector.load %arg5[%c1, %c0_1] : memref<4x4xf32, #tpu.memory_space<vmem>>, vector<1x4xf32>
    %c2 = arith.constant 2 : index
    %c0_2 = arith.constant 0 : index
    %2 = vector.load %arg5[%c2, %c0_2] : memref<4x4xf32, #tpu.memory_space<vmem>>, vector<1x4xf32>
    %c3 = arith.constant 3 : index
    %c0_3 = arith.constant 0 : index
    %3 = vector.load %arg5[%c3, %c0_3] : memref<4x4xf32, #tpu.memory_space<vmem>>, vector<1x4xf32>
    %cst = arith.constant 9.99999974E-6 : f32
    %4 = vector.broadcast %cst : f32 to vector<1x4xf32>
    %5 = arith.addf %3, %4 : vector<1x4xf32>
    %6 = math.rsqrt %5 : vector<1x4xf32>
    %7 = arith.mulf %0, %6 : vector<1x4xf32>
    %8 = arith.mulf %2, %7 : vector<1x4xf32>
    %9 = arith.subf %1, %8 : vector<1x4xf32>
    %c0_i32 = arith.constant 0 : i32
    %10 = arith.cmpi eq, %arg2, %c0_i32 : i32
    %11 = arith.extui %10 : i1 to i32
    %c0_i32_4 = arith.constant 0 : i32
    %12 = arith.cmpi ne, %11, %c0_i32_4 : i32
    scf.if %12 {
      %c0_74 = arith.constant 0 : index
      %c0_75 = arith.constant 0 : index
      %c0_76 = arith.constant 0 : index
      %107 = vector.load %arg4[%c0_74, %c0_75, %c0_76] : memref<1x64x4xbf16, #tpu.memory_space<vmem>>, vector<1x64x4xbf16>
      %108 = vector.shape_cast %107 : vector<1x64x4xbf16> to vector<64x4xbf16>
      %109 = arith.extf %108 : vector<64x4xbf16> to vector<64x4xf32>
      %110 = vector.broadcast %7 : vector<1x4xf32> to vector<64x4xf32>
      %111 = arith.mulf %109, %110 : vector<64x4xf32>
      %112 = vector.broadcast %9 : vector<1x4xf32> to vector<64x4xf32>
      %113 = arith.addf %111, %112 : vector<64x4xf32>
      %cst_77 = arith.constant 0.000000e+00 : f32
      %114 = vector.broadcast %cst_77 : f32 to vector<64x4xf32>
      %115 = arith.maximumf %113, %114 : vector<64x4xf32>
      %116 = arith.truncf %115 : vector<64x4xf32> to vector<64x4xbf16>
      %c0_78 = arith.constant 0 : index
      %c0_79 = arith.constant 0 : index
      %117 = vector.load %arg6[%c0_78, %c0_79] : memref<4x32xbf16, #tpu.memory_space<vmem>>, vector<4x32xbf16>
      %cst_80 = arith.constant dense<0.000000e+00> : vector<64x32xf32>
      %118 = tpu.matmul %116, %117, %cst_80 {dimension_numbers = #tpu.dot_dimension_numbers<[1], [0], [0], [1], [0, 0, 1, 1], [], []>} : vector<64x4xbf16>, vector<4x32xbf16>, vector<64x32xf32> -> vector<64x32xf32>
      %c1_81 = arith.constant 1 : index
      %c0_82 = arith.constant 0 : index
      %119 = vector.load %arg11[%c1_81, %c0_82] : memref<2x32xf32, #tpu.memory_space<vmem>>, vector<1x32xf32>
      %120 = vector.broadcast %119 : vector<1x32xf32> to vector<64x32xf32>
      %121 = arith.addf %118, %120 : vector<64x32xf32>
      %122 = vector.shape_cast %121 : vector<64x32xf32> to vector<1x64x32xf32>
      %123 = arith.truncf %122 : vector<1x64x32xf32> to vector<1x64x32xbf16>
      %c0_83 = arith.constant 0 : index
      %c0_84 = arith.constant 0 : index
      %c0_85 = arith.constant 0 : index
      %124 = vector.load %arg15[%c0_83, %c0_84, %c0_85] : memref<1x64x32xbf16, #tpu.memory_space<vmem>>, vector<1x64x32xbf16>
      tpu.vector_store %arg15[%c0_83, %c0_84, %c0_85], %123 {strides = array<i32>} : memref<1x64x32xbf16, #tpu.memory_space<vmem>>, vector<1x64x32xbf16>,
      %cst_86 = arith.constant 0xFF800000 : f32
      %125 = vector.broadcast %cst_86 : f32 to vector<2x1x64x1xf32>
      %c0_87 = arith.constant 0 : index
      %c0_88 = arith.constant 0 : index
      %c0_89 = arith.constant 0 : index
      %c0_90 = arith.constant 0 : index
      %126 = vector.load %arg16[%c0_87, %c0_88, %c0_89, %c0_90] : memref<2x1x64x1xf32, #tpu.memory_space<vmem>>, vector<2x1x64x1xf32>
      tpu.vector_store %arg16[%c0_87, %c0_88, %c0_89, %c0_90], %125 {strides = array<i32>} : memref<2x1x64x1xf32, #tpu.memory_space<vmem>>, vector<2x1x64x1xf32>,
      %cst_91 = arith.constant 0.000000e+00 : f32
      %127 = vector.broadcast %cst_91 : f32 to vector<2x1x64x1xf32>
      %c0_92 = arith.constant 0 : index
      %c0_93 = arith.constant 0 : index
      %c0_94 = arith.constant 0 : index
      %c0_95 = arith.constant 0 : index
      %128 = vector.load %arg17[%c0_92, %c0_93, %c0_94, %c0_95] : memref<2x1x64x1xf32, #tpu.memory_space<vmem>>, vector<2x1x64x1xf32>
      tpu.vector_store %arg17[%c0_92, %c0_93, %c0_94, %c0_95], %127 {strides = array<i32>} : memref<2x1x64x1xf32, #tpu.memory_space<vmem>>, vector<2x1x64x1xf32>,
      %cst_96 = arith.constant 0.000000e+00 : f32
      %129 = vector.broadcast %cst_96 : f32 to vector<1x64x32xf32>
      %c0_97 = arith.constant 0 : index
      %c0_98 = arith.constant 0 : index
      %c0_99 = arith.constant 0 : index
      %130 = vector.load %arg18[%c0_97, %c0_98, %c0_99] : memref<1x64x32xf32, #tpu.memory_space<vmem>>, vector<1x64x32xf32>
      tpu.vector_store %arg18[%c0_97, %c0_98, %c0_99], %129 {strides = array<i32>} : memref<1x64x32xf32, #tpu.memory_space<vmem>>, vector<1x64x32xf32>,
    } else {
    }
    %c0_5 = arith.constant 0 : index
    %c0_6 = arith.constant 0 : index
    %c0_7 = arith.constant 0 : index
    %13 = vector.load %arg3[%c0_5, %c0_6, %c0_7] : memref<1x128x4xbf16, #tpu.memory_space<vmem>>, vector<1x128x4xbf16>
    %14 = vector.shape_cast %13 : vector<1x128x4xbf16> to vector<128x4xbf16>
    %15 = arith.extf %14 : vector<128x4xbf16> to vector<128x4xf32>
    %16 = vector.broadcast %7 : vector<1x4xf32> to vector<128x4xf32>
    %17 = arith.mulf %15, %16 : vector<128x4xf32>
    %18 = vector.broadcast %9 : vector<1x4xf32> to vector<128x4xf32>
    %19 = arith.addf %17, %18 : vector<128x4xf32>
    %cst_8 = arith.constant 0.000000e+00 : f32
    %20 = vector.broadcast %cst_8 : f32 to vector<128x4xf32>
    %21 = arith.maximumf %19, %20 : vector<128x4xf32>
    %22 = arith.truncf %21 : vector<128x4xf32> to vector<128x4xbf16>
    %c0_9 = arith.constant 0 : index
    %c0_10 = arith.constant 0 : index
    %23 = vector.load %arg7[%c0_9, %c0_10] : memref<4x32xbf16, #tpu.memory_space<vmem>>, vector<4x32xbf16>
    %cst_11 = arith.constant dense<0.000000e+00> : vector<128x32xf32>
    %24 = tpu.matmul %22, %23, %cst_11 {dimension_numbers = #tpu.dot_dimension_numbers<[1], [0], [0], [1], [0, 0, 1, 1], [], []>} : vector<128x4xbf16>, vector<4x32xbf16>, vector<128x32xf32> -> vector<128x32xf32>
    %c0_12 = arith.constant 0 : index
    %c0_13 = arith.constant 0 : index
    %25 = vector.load %arg11[%c0_12, %c0_13] : memref<2x32xf32, #tpu.memory_space<vmem>>, vector<1x32xf32>
    %26 = vector.broadcast %25 : vector<1x32xf32> to vector<128x32xf32>
    %27 = arith.addf %24, %26 : vector<128x32xf32>
    %c0_14 = arith.constant 0 : index
    %c0_15 = arith.constant 0 : index
    %28 = vector.load %arg8[%c0_14, %c0_15] : memref<4x32xbf16, #tpu.memory_space<vmem>>, vector<4x32xbf16>
    %cst_16 = arith.constant dense<0.000000e+00> : vector<128x32xf32>
    %29 = tpu.matmul %22, %28, %cst_16 {dimension_numbers = #tpu.dot_dimension_numbers<[1], [0], [0], [1], [0, 0, 1, 1], [], []>} : vector<128x4xbf16>, vector<4x32xbf16>, vector<128x32xf32> -> vector<128x32xf32>
    %c0_17 = arith.constant 0 : index
    %c0_18 = arith.constant 0 : index
    %30 = vector.load %arg12[%c0_17, %c0_18] : memref<1x32xf32, #tpu.memory_space<vmem>>, vector<1x32xf32>
    %31 = vector.broadcast %30 : vector<1x32xf32> to vector<128x32xf32>
    %32 = arith.addf %29, %31 : vector<128x32xf32>
    %33 = vector.shape_cast %27 : vector<128x32xf32> to vector<1x128x32xf32>
    %34 = arith.truncf %33 : vector<1x128x32xf32> to vector<1x128x32xbf16>
    %35 = vector.shape_cast %32 : vector<128x32xf32> to vector<1x128x32xf32>
    %36 = arith.truncf %35 : vector<1x128x32xf32> to vector<1x128x32xbf16>
    %c0_19 = arith.constant 0 : index
    %c0_20 = arith.constant 0 : index
    %c0_21 = arith.constant 0 : index
    %37 = vector.load %arg15[%c0_19, %c0_20, %c0_21] : memref<1x64x32xbf16, #tpu.memory_space<vmem>>, vector<1x64x32xbf16>
    %38 = vector.extract_strided_slice %37 {offsets = [0, 0, 0], sizes = [1, 64, 16], strides = [1, 1, 1]} : vector<1x64x32xbf16> to vector<1x64x16xbf16>
    %39 = vector.extract_strided_slice %34 {offsets = [0, 0, 0], sizes = [1, 128, 16], strides = [1, 1, 1]} : vector<1x128x32xbf16> to vector<1x128x16xbf16>
    %40 = vector.extract_strided_slice %36 {offsets = [0, 0, 0], sizes = [1, 128, 16], strides = [1, 1, 1]} : vector<1x128x32xbf16> to vector<1x128x16xbf16>
    "tpu.trace_start"() <{level = 10 : i32, message = "bqd,bkd->bqk"}> : () -> ()
    %cst_22 = arith.constant dense<0.000000e+00> : vector<1x64x128xf32>
    %41 = tpu.matmul %38, %39, %cst_22 {dimension_numbers = #tpu.dot_dimension_numbers<[2], [2], [1], [1], [0, 0, 0, 1, 1, 1], [0], [0]>} : vector<1x64x16xbf16>, vector<1x128x16xbf16>, vector<1x64x128xf32> -> vector<1x64x128xf32>
    "tpu.trace_stop"() : () -> ()
    %c0_23 = arith.constant 0 : index
    %c0_24 = arith.constant 0 : index
    %c0_25 = arith.constant 0 : index
    %c0_26 = arith.constant 0 : index
    %42 = vector.load %arg16[%c0_23, %c0_24, %c0_25, %c0_26] : memref<2x1x64x1xf32, #tpu.memory_space<vmem>>, vector<1x1x64x1xf32>
    %43 = vector.shape_cast %42 : vector<1x1x64x1xf32> to vector<1x64x1xf32>
    %cst_27 = arith.constant dense<0xFF800000> : vector<1x64xf32>
    %44 = vector.multi_reduction <maximumf>, %41, %cst_27 [2] : vector<1x64x128xf32> to vector<1x64xf32>
    %45 = vector.shape_cast %44 : vector<1x64xf32> to vector<1x64x1xf32>
    %46 = arith.maximumf %43, %45 : vector<1x64x1xf32>
    %47 = arith.subf %43, %46 : vector<1x64x1xf32>
    %48 = math.exp %47 : vector<1x64x1xf32>
    %49 = vector.broadcast %46 : vector<1x64x1xf32> to vector<1x64x128xf32>
    %50 = arith.subf %41, %49 : vector<1x64x128xf32>
    %51 = math.exp %50 : vector<1x64x128xf32>
    %c0_28 = arith.constant 0 : index
    %c0_29 = arith.constant 0 : index
    %c0_30 = arith.constant 0 : index
    %c0_31 = arith.constant 0 : index
    %52 = vector.load %arg17[%c0_28, %c0_29, %c0_30, %c0_31] : memref<2x1x64x1xf32, #tpu.memory_space<vmem>>, vector<1x1x64x1xf32>
    %53 = vector.shape_cast %52 : vector<1x1x64x1xf32> to vector<1x64x1xf32>
    %54 = arith.mulf %48, %53 : vector<1x64x1xf32>
    %cst_32 = arith.constant dense<0.000000e+00> : vector<1x64xf32>
    %55 = vector.multi_reduction <add>, %51, %cst_32 [2] : vector<1x64x128xf32> to vector<1x64xf32>
    %56 = vector.shape_cast %55 : vector<1x64xf32> to vector<1x64x1xf32>
    %57 = arith.addf %54, %56 : vector<1x64x1xf32>
    %c0_33 = arith.constant 0 : index
    %c0_34 = arith.constant 0 : index
    %c0_35 = arith.constant 0 : index
    %c0_36 = arith.constant 0 : index
    %58 = vector.load %arg17[%c0_33, %c0_34, %c0_35, %c0_36] : memref<2x1x64x1xf32, #tpu.memory_space<vmem>>, vector<1x1x64x1xf32>
    %59 = vector.shape_cast %58 : vector<1x1x64x1xf32> to vector<1x64x1xf32>
    %60 = vector.shape_cast %57 : vector<1x64x1xf32> to vector<1x1x64x1xf32>
    tpu.vector_store %arg17[%c0_33, %c0_34, %c0_35, %c0_36], %60 {strides = array<i32>} : memref<2x1x64x1xf32, #tpu.memory_space<vmem>>, vector<1x1x64x1xf32>,
    %c0_37 = arith.constant 0 : index
    %c0_38 = arith.constant 0 : index
    %c0_39 = arith.constant 0 : index
    %c0_40 = arith.constant 0 : index
    %61 = vector.load %arg16[%c0_37, %c0_38, %c0_39, %c0_40] : memref<2x1x64x1xf32, #tpu.memory_space<vmem>>, vector<1x1x64x1xf32>
    %62 = vector.shape_cast %61 : vector<1x1x64x1xf32> to vector<1x64x1xf32>
    %63 = vector.shape_cast %46 : vector<1x64x1xf32> to vector<1x1x64x1xf32>
    tpu.vector_store %arg16[%c0_37, %c0_38, %c0_39, %c0_40], %63 {strides = array<i32>} : memref<2x1x64x1xf32, #tpu.memory_space<vmem>>, vector<1x1x64x1xf32>,
    %64 = arith.truncf %51 : vector<1x64x128xf32> to vector<1x64x128xbf16>
    "tpu.trace_start"() <{level = 10 : i32, message = "bqk,bkd->bqd"}> : () -> ()
    %cst_41 = arith.constant dense<0.000000e+00> : vector<1x64x16xf32>
    %65 = tpu.matmul %64, %40, %cst_41 {dimension_numbers = #tpu.dot_dimension_numbers<[2], [1], [1], [2], [0, 0, 0, 1, 1, 2], [0], [0]>} : vector<1x64x128xbf16>, vector<1x128x16xbf16>, vector<1x64x16xf32> -> vector<1x64x16xf32>
    "tpu.trace_stop"() : () -> ()
    %c0_42 = arith.constant 0 : index
    %c0_43 = arith.constant 0 : index
    %c0_44 = arith.constant 0 : index
    %66 = vector.load %arg18[%c0_42, %c0_43, %c0_44] : memref<1x64x32xf32, #tpu.memory_space<vmem>>, vector<1x64x16xf32>
    %67 = vector.broadcast %48 : vector<1x64x1xf32> to vector<1x64x16xf32>
    %68 = arith.mulf %67, %66 : vector<1x64x16xf32>
    %69 = arith.addf %68, %65 : vector<1x64x16xf32>
    %c0_45 = arith.constant 0 : index
    %c0_46 = arith.constant 0 : index
    %c0_47 = arith.constant 0 : index
    %70 = vector.load %arg18[%c0_45, %c0_46, %c0_47] : memref<1x64x32xf32, #tpu.memory_space<vmem>>, vector<1x64x16xf32>
    tpu.vector_store %arg18[%c0_45, %c0_46, %c0_47], %69 {strides = array<i32>} : memref<1x64x32xf32, #tpu.memory_space<vmem>>, vector<1x64x16xf32>,
    %71 = vector.extract_strided_slice %37 {offsets = [0, 0, 16], sizes = [1, 64, 16], strides = [1, 1, 1]} : vector<1x64x32xbf16> to vector<1x64x16xbf16>
    %72 = vector.extract_strided_slice %34 {offsets = [0, 0, 16], sizes = [1, 128, 16], strides = [1, 1, 1]} : vector<1x128x32xbf16> to vector<1x128x16xbf16>
    %73 = vector.extract_strided_slice %36 {offsets = [0, 0, 16], sizes = [1, 128, 16], strides = [1, 1, 1]} : vector<1x128x32xbf16> to vector<1x128x16xbf16>
    "tpu.trace_start"() <{level = 10 : i32, message = "bqd,bkd->bqk"}> : () -> ()
    %cst_48 = arith.constant dense<0.000000e+00> : vector<1x64x128xf32>
    %74 = tpu.matmul %71, %72, %cst_48 {dimension_numbers = #tpu.dot_dimension_numbers<[2], [2], [1], [1], [0, 0, 0, 1, 1, 1], [0], [0]>} : vector<1x64x16xbf16>, vector<1x128x16xbf16>, vector<1x64x128xf32> -> vector<1x64x128xf32>
    "tpu.trace_stop"() : () -> ()
    %c1_49 = arith.constant 1 : index
    %c0_50 = arith.constant 0 : index
    %c0_51 = arith.constant 0 : index
    %c0_52 = arith.constant 0 : index
    %75 = vector.load %arg16[%c1_49, %c0_50, %c0_51, %c0_52] : memref<2x1x64x1xf32, #tpu.memory_space<vmem>>, vector<1x1x64x1xf32>
    %76 = vector.shape_cast %75 : vector<1x1x64x1xf32> to vector<1x64x1xf32>
    %cst_53 = arith.constant dense<0xFF800000> : vector<1x64xf32>
    %77 = vector.multi_reduction <maximumf>, %74, %cst_53 [2] : vector<1x64x128xf32> to vector<1x64xf32>
    %78 = vector.shape_cast %77 : vector<1x64xf32> to vector<1x64x1xf32>
    %79 = arith.maximumf %76, %78 : vector<1x64x1xf32>
    %80 = arith.subf %76, %79 : vector<1x64x1xf32>
    %81 = math.exp %80 : vector<1x64x1xf32>
    %82 = vector.broadcast %79 : vector<1x64x1xf32> to vector<1x64x128xf32>
    %83 = arith.subf %74, %82 : vector<1x64x128xf32>
    %84 = math.exp %83 : vector<1x64x128xf32>
    %c1_54 = arith.constant 1 : index
    %c0_55 = arith.constant 0 : index
    %c0_56 = arith.constant 0 : index
    %c0_57 = arith.constant 0 : index
    %85 = vector.load %arg17[%c1_54, %c0_55, %c0_56, %c0_57] : memref<2x1x64x1xf32, #tpu.memory_space<vmem>>, vector<1x1x64x1xf32>
    %86 = vector.shape_cast %85 : vector<1x1x64x1xf32> to vector<1x64x1xf32>
    %87 = arith.mulf %81, %86 : vector<1x64x1xf32>
    %cst_58 = arith.constant dense<0.000000e+00> : vector<1x64xf32>
    %88 = vector.multi_reduction <add>, %84, %cst_58 [2] : vector<1x64x128xf32> to vector<1x64xf32>
    %89 = vector.shape_cast %88 : vector<1x64xf32> to vector<1x64x1xf32>
    %90 = arith.addf %87, %89 : vector<1x64x1xf32>
    %c1_59 = arith.constant 1 : index
    %c0_60 = arith.constant 0 : index
    %c0_61 = arith.constant 0 : index
    %c0_62 = arith.constant 0 : index
    %91 = vector.load %arg17[%c1_59, %c0_60, %c0_61, %c0_62] : memref<2x1x64x1xf32, #tpu.memory_space<vmem>>, vector<1x1x64x1xf32>
    %92 = vector.shape_cast %91 : vector<1x1x64x1xf32> to vector<1x64x1xf32>
    %93 = vector.shape_cast %90 : vector<1x64x1xf32> to vector<1x1x64x1xf32>
    tpu.vector_store %arg17[%c1_59, %c0_60, %c0_61, %c0_62], %93 {strides = array<i32>} : memref<2x1x64x1xf32, #tpu.memory_space<vmem>>, vector<1x1x64x1xf32>,
    %c1_63 = arith.constant 1 : index
    %c0_64 = arith.constant 0 : index
    %c0_65 = arith.constant 0 : index
    %c0_66 = arith.constant 0 : index
    %94 = vector.load %arg16[%c1_63, %c0_64, %c0_65, %c0_66] : memref<2x1x64x1xf32, #tpu.memory_space<vmem>>, vector<1x1x64x1xf32>
    %95 = vector.shape_cast %94 : vector<1x1x64x1xf32> to vector<1x64x1xf32>
    %96 = vector.shape_cast %79 : vector<1x64x1xf32> to vector<1x1x64x1xf32>
    tpu.vector_store %arg16[%c1_63, %c0_64, %c0_65, %c0_66], %96 {strides = array<i32>} : memref<2x1x64x1xf32, #tpu.memory_space<vmem>>, vector<1x1x64x1xf32>,
    %97 = arith.truncf %84 : vector<1x64x128xf32> to vector<1x64x128xbf16>
    "tpu.trace_start"() <{level = 10 : i32, message = "bqk,bkd->bqd"}> : () -> ()
    %cst_67 = arith.constant dense<0.000000e+00> : vector<1x64x16xf32>
    %98 = tpu.matmul %97, %73, %cst_67 {dimension_numbers = #tpu.dot_dimension_numbers<[2], [1], [1], [2], [0, 0, 0, 1, 1, 2], [0], [0]>} : vector<1x64x128xbf16>, vector<1x128x16xbf16>, vector<1x64x16xf32> -> vector<1x64x16xf32>
    "tpu.trace_stop"() : () -> ()
    %c0_68 = arith.constant 0 : index
    %c0_69 = arith.constant 0 : index
    %c16 = arith.constant 16 : index
    %99 = vector.load %arg18[%c0_68, %c0_69, %c16] : memref<1x64x32xf32, #tpu.memory_space<vmem>>, vector<1x64x16xf32>
    %100 = vector.broadcast %81 : vector<1x64x1xf32> to vector<1x64x16xf32>
    %101 = arith.mulf %100, %99 : vector<1x64x16xf32>
    %102 = arith.addf %101, %98 : vector<1x64x16xf32>
    %c0_70 = arith.constant 0 : index
    %c0_71 = arith.constant 0 : index
    %c16_72 = arith.constant 16 : index
    %103 = vector.load %arg18[%c0_70, %c0_71, %c16_72] : memref<1x64x32xf32, #tpu.memory_space<vmem>>, vector<1x64x16xf32>
    tpu.vector_store %arg18[%c0_70, %c0_71, %c16_72], %102 {strides = array<i32>} : memref<1x64x32xf32, #tpu.memory_space<vmem>>, vector<1x64x16xf32>,
    %c1_i32 = arith.constant 1 : i32
    %104 = arith.cmpi eq, %arg2, %c1_i32 : i32
    %105 = arith.extui %104 : i1 to i32
    %c0_i32_73 = arith.constant 0 : i32
    %106 = arith.cmpi ne, %105, %c0_i32_73 : i32
    scf.if %106 {
      %c0_74 = arith.constant 0 : index
      %c0_75 = arith.constant 0 : index
      %c0_76 = arith.constant 0 : index
      %c0_77 = arith.constant 0 : index
      %107 = vector.load %arg17[%c0_74, %c0_75, %c0_76, %c0_77] : memref<2x1x64x1xf32, #tpu.memory_space<vmem>>, vector<1x1x64x1xf32>
      %108 = vector.shape_cast %107 : vector<1x1x64x1xf32> to vector<1x64x1xf32>
      %109 = tpu.reciprocal %108 {approx = true} : vector<1x64x1xf32> -> vector<1x64x1xf32>
      %c0_78 = arith.constant 0 : index
      %c0_79 = arith.constant 0 : index
      %c0_80 = arith.constant 0 : index
      %110 = vector.load %arg18[%c0_78, %c0_79, %c0_80] : memref<1x64x32xf32, #tpu.memory_space<vmem>>, vector<1x64x16xf32>
      %111 = vector.broadcast %109 : vector<1x64x1xf32> to vector<1x64x16xf32>
      %112 = arith.mulf %110, %111 : vector<1x64x16xf32>
      %c0_81 = arith.constant 0 : index
      %c0_82 = arith.constant 0 : index
      %c0_83 = arith.constant 0 : index
      %113 = vector.load %arg18[%c0_81, %c0_82, %c0_83] : memref<1x64x32xf32, #tpu.memory_space<vmem>>, vector<1x64x16xf32>
      tpu.vector_store %arg18[%c0_81, %c0_82, %c0_83], %112 {strides = array<i32>} : memref<1x64x32xf32, #tpu.memory_space<vmem>>, vector<1x64x16xf32>,
      %c1_84 = arith.constant 1 : index
      %c0_85 = arith.constant 0 : index
      %c0_86 = arith.constant 0 : index
      %c0_87 = arith.constant 0 : index
      %114 = vector.load %arg17[%c1_84, %c0_85, %c0_86, %c0_87] : memref<2x1x64x1xf32, #tpu.memory_space<vmem>>, vector<1x1x64x1xf32>
      %115 = vector.shape_cast %114 : vector<1x1x64x1xf32> to vector<1x64x1xf32>
      %116 = tpu.reciprocal %115 {approx = true} : vector<1x64x1xf32> -> vector<1x64x1xf32>
      %c0_88 = arith.constant 0 : index
      %c0_89 = arith.constant 0 : index
      %c16_90 = arith.constant 16 : index
      %117 = vector.load %arg18[%c0_88, %c0_89, %c16_90] : memref<1x64x32xf32, #tpu.memory_space<vmem>>, vector<1x64x16xf32>
      %118 = vector.broadcast %116 : vector<1x64x1xf32> to vector<1x64x16xf32>
      %119 = arith.mulf %117, %118 : vector<1x64x16xf32>
      %c0_91 = arith.constant 0 : index
      %c0_92 = arith.constant 0 : index
      %c16_93 = arith.constant 16 : index
      %120 = vector.load %arg18[%c0_91, %c0_92, %c16_93] : memref<1x64x32xf32, #tpu.memory_space<vmem>>, vector<1x64x16xf32>
      tpu.vector_store %arg18[%c0_91, %c0_92, %c16_93], %119 {strides = array<i32>} : memref<1x64x32xf32, #tpu.memory_space<vmem>>, vector<1x64x16xf32>,
      %c0_94 = arith.constant 0 : index
      %c0_95 = arith.constant 0 : index
      %c0_96 = arith.constant 0 : index
      %121 = vector.load %arg18[%c0_94, %c0_95, %c0_96] : memref<1x64x32xf32, #tpu.memory_space<vmem>>, vector<1x64x32xf32>
      %122 = vector.shape_cast %121 : vector<1x64x32xf32> to vector<64x32xf32>
      %123 = arith.truncf %122 : vector<64x32xf32> to vector<64x32xbf16>
      %c0_97 = arith.constant 0 : index
      %c0_98 = arith.constant 0 : index
      %c0_99 = arith.constant 0 : index
      %124 = vector.load %arg4[%c0_97, %c0_98, %c0_99] : memref<1x64x4xbf16, #tpu.memory_space<vmem>>, vector<1x64x4xbf16>
      %125 = vector.shape_cast %124 : vector<1x64x4xbf16> to vector<64x4xbf16>
      %126 = arith.extf %125 : vector<64x4xbf16> to vector<64x4xf32>
      %127 = vector.broadcast %7 : vector<1x4xf32> to vector<64x4xf32>
      %128 = arith.mulf %126, %127 : vector<64x4xf32>
      %129 = vector.broadcast %9 : vector<1x4xf32> to vector<64x4xf32>
      %130 = arith.addf %128, %129 : vector<64x4xf32>
      %cst_100 = arith.constant 0.000000e+00 : f32
      %131 = vector.broadcast %cst_100 : f32 to vector<64x4xf32>
      %132 = arith.maximumf %130, %131 : vector<64x4xf32>
      %133 = arith.truncf %132 : vector<64x4xf32> to vector<64x4xbf16>
      %c0_101 = arith.constant 0 : index
      %c0_102 = arith.constant 0 : index
      %134 = vector.load %arg9[%c0_101, %c0_102] : memref<4x128xbf16, #tpu.memory_space<vmem>>, vector<4x128xbf16>
      %cst_103 = arith.constant dense<0.000000e+00> : vector<64x128xf32>
      %135 = tpu.matmul %133, %134, %cst_103 {dimension_numbers = #tpu.dot_dimension_numbers<[1], [0], [0], [1], [0, 0, 1, 1], [], []>} : vector<64x4xbf16>, vector<4x128xbf16>, vector<64x128xf32> -> vector<64x128xf32>
      %c0_104 = arith.constant 0 : index
      %c0_105 = arith.constant 0 : index
      %136 = vector.load %arg10[%c0_104, %c0_105] : memref<32x128xbf16, #tpu.memory_space<vmem>>, vector<32x128xbf16>
      %cst_106 = arith.constant dense<0.000000e+00> : vector<64x128xf32>
      %137 = tpu.matmul %123, %136, %cst_106 {dimension_numbers = #tpu.dot_dimension_numbers<[1], [0], [0], [1], [0, 0, 1, 1], [], []>} : vector<64x32xbf16>, vector<32x128xbf16>, vector<64x128xf32> -> vector<64x128xf32>
      %c0_107 = arith.constant 0 : index
      %c0_108 = arith.constant 0 : index
      %138 = vector.load %arg13[%c0_107, %c0_108] : memref<1x128xf32, #tpu.memory_space<vmem>>, vector<1x128xf32>
      %139 = vector.broadcast %138 : vector<1x128xf32> to vector<64x128xf32>
      %140 = arith.addf %137, %139 : vector<64x128xf32>
      %141 = arith.addf %140, %135 : vector<64x128xf32>
      %142 = vector.shape_cast %141 : vector<64x128xf32> to vector<1x64x128xf32>
      %143 = arith.truncf %142 : vector<1x64x128xf32> to vector<1x64x128xbf16>
      %c0_109 = arith.constant 0 : index
      %c0_110 = arith.constant 0 : index
      %c0_111 = arith.constant 0 : index
      %144 = vector.load %arg14[%c0_109, %c0_110, %c0_111] : memref<1x64x128xbf16, #tpu.memory_space<vmem>>, vector<1x64x128xbf16>
      tpu.vector_store %arg14[%c0_109, %c0_110, %c0_111], %143 {strides = array<i32>} : memref<1x64x128xbf16, #tpu.memory_space<vmem>>, vector<1x64x128xbf16>,
    } else {
    }
    return
  }
  func.func @transform_0(%arg0: i32, %arg1: i32, %arg2: i32) -> (i32, i32, i32) {
    %c0_i32 = arith.constant 0 : i32
    %c0_i32_0 = arith.constant 0 : i32
    return %arg0, %arg2, %c0_i32 : i32, i32, i32
  }
  func.func @transform_1(%arg0: i32, %arg1: i32, %arg2: i32) -> (i32, i32, i32) {
    %c0_i32 = arith.constant 0 : i32
    %c0_i32_0 = arith.constant 0 : i32
    return %arg0, %arg1, %c0_i32 : i32, i32, i32
  }
  func.func @transform_2(%arg0: i32, %arg1: i32, %arg2: i32) -> (i32, i32) {
    %c0_i32 = arith.constant 0 : i32
    %c0_i32_0 = arith.constant 0 : i32
    %c0_i32_1 = arith.constant 0 : i32
    return %c0_i32, %c0_i32_0 : i32, i32
  }
  func.func @transform_3(%arg0: i32, %arg1: i32, %arg2: i32) -> (i32, i32) {
    %c0_i32 = arith.constant 0 : i32
    %c0_i32_0 = arith.constant 0 : i32
    %c0_i32_1 = arith.constant 0 : i32
    return %c0_i32, %c0_i32_0 : i32, i32
  }
  func.func @transform_4(%arg0: i32, %arg1: i32, %arg2: i32) -> (i32, i32) {
    %c0_i32 = arith.constant 0 : i32
    %c0_i32_0 = arith.constant 0 : i32
    %c0_i32_1 = arith.constant 0 : i32
    return %c0_i32, %c0_i32_0 : i32, i32
  }
  func.func @transform_5(%arg0: i32, %arg1: i32, %arg2: i32) -> (i32, i32) {
    %c0_i32 = arith.constant 0 : i32
    %c0_i32_0 = arith.constant 0 : i32
    %c0_i32_1 = arith.constant 0 : i32
    return %c0_i32, %c0_i32_0 : i32, i32
  }
  func.func @transform_6(%arg0: i32, %arg1: i32, %arg2: i32) -> (i32, i32) {
    %c0_i32 = arith.constant 0 : i32
    %c0_i32_0 = arith.constant 0 : i32
    %c0_i32_1 = arith.constant 0 : i32
    return %c0_i32, %c0_i32_0 : i32, i32
  }
  func.func @transform_7(%arg0: i32, %arg1: i32, %arg2: i32) -> (i32, i32) {
    %c0_i32 = arith.constant 0 : i32
    %c0_i32_0 = arith.constant 0 : i32
    %c0_i32_1 = arith.constant 0 : i32
    return %c0_i32, %c0_i32_0 : i32, i32
  }
  func.func @transform_8(%arg0: i32, %arg1: i32, %arg2: i32) -> (i32, i32) {
    %c0_i32 = arith.constant 0 : i32
    %c0_i32_0 = arith.constant 0 : i32
    %c0_i32_1 = arith.constant 0 : i32
    return %c0_i32, %c0_i32_0 : i32, i32
  }
  func.func @transform_9(%arg0: i32, %arg1: i32, %arg2: i32) -> (i32, i32) {
    %c0_i32 = arith.constant 0 : i32
    %c0_i32_0 = arith.constant 0 : i32
    %c0_i32_1 = arith.constant 0 : i32
    return %c0_i32, %c0_i32_0 : i32, i32
  }
  func.func @transform_10(%arg0: i32, %arg1: i32, %arg2: i32) -> (i32, i32) {
    %c0_i32 = arith.constant 0 : i32
    %c0_i32_0 = arith.constant 0 : i32
    %c0_i32_1 = arith.constant 0 : i32
    return %c0_i32, %c0_i32_0 : i32, i32
  }
  func.func @transform_11(%arg0: i32, %arg1: i32, %arg2: i32) -> (i32, i32, i32) {
    %c0_i32 = arith.constant 0 : i32
    %c0_i32_0 = arith.constant 0 : i32
    return %arg0, %arg1, %c0_i32 : i32, i32, i32
  }
}

</mosaic_0001>

<llo_original>
// kernel: tpu_custom_call.1
$region0: #{tpu_custom_call.1}
  #allocation0 [shape = 'u32[]', space=smem, size = 0x4, offset = 0x4, fixed_abs, tag = 'smem constant byte address 0x4 - core index']
  #allocation1 [shape = 'u32[144,128]{1,0:T(1,128)}', space=vmem, size = 0x12000, scoped, tag = 'internal scratch']
  #allocation2 [shape = 'bf16[1,64,32]{2,1,0:T(16,128)(2,1)}', space=vmem, size = 0x4000, scoped, tag = 'scratch operand']
  #allocation3 [shape = 'f32[2,1,64,1]{3,2,1,0:T(8,128)}', space=vmem, size = 0x10000, scoped, tag = 'scratch operand']
  #allocation4 [shape = 'f32[2,1,64,1]{3,2,1,0:T(8,128)}', space=vmem, size = 0x10000, scoped, tag = 'scratch operand']
  #allocation5 [shape = 'f32[1,64,32]{2,1,0:T(8,128)}', space=vmem, size = 0x8000, scoped, tag = 'scratch operand']
  %s0 = inlined_call_operand.vmem [shape: bf16[2,256,4], index: 0, kind: input, shape index: {}]
  %s1 = inlined_call_operand.vmem [shape: bf16[2,64,4], index: 1, kind: input, shape index: {}]
  %s2 = inlined_call_operand.vmem [shape: f32[4,4], index: 2, kind: input, shape index: {}]
  %s3 = inlined_call_operand.vmem [shape: bf16[4,32], index: 3, kind: input, shape index: {}]
  %s4 = inlined_call_operand.vmem [shape: bf16[4,32], index: 4, kind: input, shape index: {}]
  %s5 = inlined_call_operand.vmem [shape: bf16[4,32], index: 5, kind: input, shape index: {}]
  %s6 = inlined_call_operand.vmem [shape: bf16[4,128], index: 6, kind: input, shape index: {}]
  %s7 = inlined_call_operand.vmem [shape: bf16[32,128], index: 7, kind: input, shape index: {}]
  %s8 = inlined_call_operand.vmem [shape: f32[2,32], index: 8, kind: input, shape index: {}]
  %s9 = inlined_call_operand.vmem [shape: f32[1,32], index: 9, kind: input, shape index: {}]
  %s10 = inlined_call_operand.vmem [shape: f32[1,128], index: 10, kind: input, shape index: {}]
  %s11 = inlined_call_operand.hbm [shape: bf16[2,64,128], index: 11, kind: output, shape index: {}]
  %s12 = sld [smem:[#allocation0]]
  $region85: #{tpu_custom_call.1} parent=0
    _
  %s14 = ssub.s32 1, %s12
  %s15 = scalar_select 0, %s14, %s12
  $region1: #{tpu_custom_call.1} parent=0
    #allocation6 [shape = 'u8[32768]{0}', space=vmem, size = 0x8000, scoped, tag = 'output window, operand 0']
    #allocation7 [shape = 's32[2]{0}', space=sflag, size = 0x8, scoped, tag = 'scoped memory for tpu_custom_call.1']
    %16 = vsyncpa [#allocation7], 0
    %s17 = scalar_lea.sflag [#allocation7], 1
    %18 = vsyncpa %s17, 0
    loop: start=0, step=1, limit=6
    $region2: #{tpu_custom_call.1} parent=1 // loop_pre_header
      _
    $region3: #{tpu_custom_call.1} parent=1 // loop_header
      %s20 = sphi 0, %s24
      %p21 = scmp.ge.s32.totalorder %s20, 6
      %s27 = sphi 0, %s46
      %s28 = sphi 0, %s42
      %s29 = sphi 0, %s38
      %s30 = sphi 0, %s27
      %s31 = sphi 0, %s28
      %s32 = sphi 0, %s29
      %s33 = sphi 0, %s30
      %s34 = sphi 0, %s31
      %s35 = sphi 0, %s32
      %s51 = sphi 0, %s53
      %s54 = sphi 0, %s51
      %s55 = sphi 0, %s54
      %s71 = sphi 0, %s55
      %s79 = sphi 0, %s81
      %s82 = sphi 0, %s79
      %s83 = sphi 0, %s82
      %s99 = sphi 0, %s83
      %s103 = sphi 0, %s103
      %s105 = sphi 0, %s103
      %s106 = sphi 0, %s105
      %s120 = sphi 0, %s106
      %s124 = sphi 0, %s124
      %s126 = sphi 0, %s124
      %s127 = sphi 0, %s126
      %s141 = sphi 0, %s127
      %s145 = sphi 0, %s145
      %s147 = sphi 0, %s145
      %s148 = sphi 0, %s147
      %s162 = sphi 0, %s148
      %s166 = sphi 0, %s166
      %s168 = sphi 0, %s166
      %s169 = sphi 0, %s168
      %s183 = sphi 0, %s169
      %s187 = sphi 0, %s187
      %s189 = sphi 0, %s187
      %s190 = sphi 0, %s189
      %s204 = sphi 0, %s190
      %s208 = sphi 0, %s208
      %s210 = sphi 0, %s208
      %s211 = sphi 0, %s210
      %s225 = sphi 0, %s211
      %s229 = sphi 0, %s229
      %s231 = sphi 0, %s229
      %s232 = sphi 0, %s231
      %s246 = sphi 0, %s232
      %s250 = sphi 0, %s250
      %s252 = sphi 0, %s250
      %s253 = sphi 0, %s252
      %s267 = sphi 0, %s253
      %s271 = sphi 0, %s271
      %s273 = sphi 0, %s271
      %s274 = sphi 0, %s273
      %s288 = sphi 0, %s274
      %s296 = sphi 0, %s298
      %s299 = sphi 0, %s296
      %s300 = sphi 0, %s299
      %s316 = sphi 0, %s300
    $region4: #{tpu_custom_call.1} parent=1 // loop_header_branch
      %23 = sbr.rel (%p21) target = $region8
    $region5: #{tpu_custom_call.1} parent=1 // loop_body
      %s25 = ssub.s32 %s20, 1
      %s26 = ssub.s32 %s20, 2
      %s36 = sadd.s32 1, %s29
      %p37 = scmp.ge.s32.totalorder %s36, 2
      %s38 = scalar_select %p37, 0, %s36
      %s39 = sadd.s32 1, %s28
      %s40 = scalar_select %p37, %s39, %s28
      %p41 = scmp.ge.s32.totalorder %s40, 1
      %s42 = scalar_select %p41, 0, %s40
      %s43 = sadd.s32 1, %s27
      %s44 = scalar_select %p41, %s43, %s27
      %p45 = scmp.ge.s32.totalorder %s44, 2
      %s46 = scalar_select %p45, 0, %s44
      %s47 = ssub.s32 %s27, %s46
      %s48 = ssub.s32 %s29, %s38
      %s49 = sor.u32 %s47, %s48
      %p50 = scmp.eq.s32.totalorder %s49, 0
      %s52 = sadd.s32 %s51, 1
      %s53 = scalar_select %p50, %s51, %s52
      %p56 = pneg %p50
      %p57 = scmp.eq.s32.totalorder %s20, 3
      %p58 = por %p56, %p57
      %p59 = scmp.ne.s32.totalorder %s51, %s54
      %p60 = scmp.eq.s32.totalorder %s20, 0
      %p61 = por %p59, %p60
      %p62 = scmp.ne.s32.totalorder %s51, %s54
      %p63 = scmp.eq.s32.totalorder %s25, 3
      %p64 = por %p62, %p63
      %p65 = scmp.ne.s32.totalorder %s54, %s55
      %p66 = scmp.eq.s32.totalorder %s25, 0
      %p67 = por %p65, %p66
      %p68 = scmp.ne.s32.totalorder %s54, %s55
      %p69 = scmp.eq.s32.totalorder %s26, 3
      %p70 = por %p68, %p69
      %p72 = scmp.ne.s32.totalorder %s55, %s71
      %p73 = scmp.eq.s32.totalorder %s26, 0
      %p74 = por %p72, %p73
      %s75 = ssub.s32 %s27, %s46
      %s76 = ssub.s32 %s28, %s42
      %s77 = sor.u32 %s75, %s76
      %p78 = scmp.eq.s32.totalorder %s77, 0
      %s80 = sadd.s32 %s79, 1
      %s81 = scalar_select %p78, %s79, %s80
      %p84 = pneg %p78
      %p85 = scmp.eq.s32.totalorder %s20, 3
      %p86 = por %p84, %p85
      %p87 = scmp.ne.s32.totalorder %s79, %s82
      %p88 = scmp.eq.s32.totalorder %s20, 0
      %p89 = por %p87, %p88
      %p90 = scmp.ne.s32.totalorder %s79, %s82
      %p91 = scmp.eq.s32.totalorder %s25, 3
      %p92 = por %p90, %p91
      %p93 = scmp.ne.s32.totalorder %s82, %s83
      %p94 = scmp.eq.s32.totalorder %s25, 0
      %p95 = por %p93, %p94
      %p96 = scmp.ne.s32.totalorder %s82, %s83
      %p97 = scmp.eq.s32.totalorder %s26, 3
      %p98 = por %p96, %p97
      %p100 = scmp.ne.s32.totalorder %s83, %s99
      %p101 = scmp.eq.s32.totalorder %s26, 0
      %p102 = por %p100, %p101
      %s104 = sadd.s32 %s103, 1
      %p107 = scmp.eq.s32.totalorder %s20, 3
      %p108 = scmp.ne.s32.totalorder %s103, %s105
      %p109 = scmp.eq.s32.totalorder %s20, 0
      %p110 = por %p108, %p109
      %p111 = scmp.ne.s32.totalorder %s103, %s105
      %p112 = scmp.eq.s32.totalorder %s25, 3
      %p113 = por %p111, %p112
      %p114 = scmp.ne.s32.totalorder %s105, %s106
      %p115 = scmp.eq.s32.totalorder %s25, 0
      %p116 = por %p114, %p115
      %p117 = scmp.ne.s32.totalorder %s105, %s106
      %p118 = scmp.eq.s32.totalorder %s26, 3
      %p119 = por %p117, %p118
      %p121 = scmp.ne.s32.totalorder %s106, %s120
      %p122 = scmp.eq.s32.totalorder %s26, 0
      %p123 = por %p121, %p122
      %s125 = sadd.s32 %s124, 1
      %p128 = scmp.eq.s32.totalorder %s20, 3
      %p129 = scmp.ne.s32.totalorder %s124, %s126
      %p130 = scmp.eq.s32.totalorder %s20, 0
      %p131 = por %p129, %p130
      %p132 = scmp.ne.s32.totalorder %s124, %s126
      %p133 = scmp.eq.s32.totalorder %s25, 3
      %p134 = por %p132, %p133
      %p135 = scmp.ne.s32.totalorder %s126, %s127
      %p136 = scmp.eq.s32.totalorder %s25, 0
      %p137 = por %p135, %p136
      %p138 = scmp.ne.s32.totalorder %s126, %s127
      %p139 = scmp.eq.s32.totalorder %s26, 3
      %p140 = por %p138, %p139
      %p142 = scmp.ne.s32.totalorder %s127, %s141
      %p143 = scmp.eq.s32.totalorder %s26, 0
      %p144 = por %p142, %p143
      %s146 = sadd.s32 %s145, 1
      %p149 = scmp.eq.s32.totalorder %s20, 3
      %p150 = scmp.ne.s32.totalorder %s145, %s147
      %p151 = scmp.eq.s32.totalorder %s20, 0
      %p152 = por %p150, %p151
      %p153 = scmp.ne.s32.totalorder %s145, %s147
      %p154 = scmp.eq.s32.totalorder %s25, 3
      %p155 = por %p153, %p154
      %p156 = scmp.ne.s32.totalorder %s147, %s148
      %p157 = scmp.eq.s32.totalorder %s25, 0
      %p158 = por %p156, %p157
      %p159 = scmp.ne.s32.totalorder %s147, %s148
      %p160 = scmp.eq.s32.totalorder %s26, 3
      %p161 = por %p159, %p160
      %p163 = scmp.ne.s32.totalorder %s148, %s162
      %p164 = scmp.eq.s32.totalorder %s26, 0
      %p165 = por %p163, %p164
      %s167 = sadd.s32 %s166, 1
      %p170 = scmp.eq.s32.totalorder %s20, 3
      %p171 = scmp.ne.s32.totalorder %s166, %s168
      %p172 = scmp.eq.s32.totalorder %s20, 0
      %p173 = por %p171, %p172
      %p174 = scmp.ne.s32.totalorder %s166, %s168
      %p175 = scmp.eq.s32.totalorder %s25, 3
      %p176 = por %p174, %p175
      %p177 = scmp.ne.s32.totalorder %s168, %s169
      %p178 = scmp.eq.s32.totalorder %s25, 0
      %p179 = por %p177, %p178
      %p180 = scmp.ne.s32.totalorder %s168, %s169
      %p181 = scmp.eq.s32.totalorder %s26, 3
      %p182 = por %p180, %p181
      %p184 = scmp.ne.s32.totalorder %s169, %s183
      %p185 = scmp.eq.s32.totalorder %s26, 0
      %p186 = por %p184, %p185
      %s188 = sadd.s32 %s187, 1
      %p191 = scmp.eq.s32.totalorder %s20, 3
      %p192 = scmp.ne.s32.totalorder %s187, %s189
      %p193 = scmp.eq.s32.totalorder %s20, 0
      %p194 = por %p192, %p193
      %p195 = scmp.ne.s32.totalorder %s187, %s189
      %p196 = scmp.eq.s32.totalorder %s25, 3
      %p197 = por %p195, %p196
      %p198 = scmp.ne.s32.totalorder %s189, %s190
      %p199 = scmp.eq.s32.totalorder %s25, 0
      %p200 = por %p198, %p199
      %p201 = scmp.ne.s32.totalorder %s189, %s190
      %p202 = scmp.eq.s32.totalorder %s26, 3
      %p203 = por %p201, %p202
      %p205 = scmp.ne.s32.totalorder %s190, %s204
      %p206 = scmp.eq.s32.totalorder %s26, 0
      %p207 = por %p205, %p206
      %s209 = sadd.s32 %s208, 1
      %p212 = scmp.eq.s32.totalorder %s20, 3
      %p213 = scmp.ne.s32.totalorder %s208, %s210
      %p214 = scmp.eq.s32.totalorder %s20, 0
      %p215 = por %p213, %p214
      %p216 = scmp.ne.s32.totalorder %s208, %s210
      %p217 = scmp.eq.s32.totalorder %s25, 3
      %p218 = por %p216, %p217
      %p219 = scmp.ne.s32.totalorder %s210, %s211
      %p220 = scmp.eq.s32.totalorder %s25, 0
      %p221 = por %p219, %p220
      %p222 = scmp.ne.s32.totalorder %s210, %s211
      %p223 = scmp.eq.s32.totalorder %s26, 3
      %p224 = por %p222, %p223
      %p226 = scmp.ne.s32.totalorder %s211, %s225
      %p227 = scmp.eq.s32.totalorder %s26, 0
      %p228 = por %p226, %p227
      %s230 = sadd.s32 %s229, 1
      %p233 = scmp.eq.s32.totalorder %s20, 3
      %p234 = scmp.ne.s32.totalorder %s229, %s231
      %p235 = scmp.eq.s32.totalorder %s20, 0
      %p236 = por %p234, %p235
      %p237 = scmp.ne.s32.totalorder %s229, %s231
      %p238 = scmp.eq.s32.totalorder %s25, 3
      %p239 = por %p237, %p238
      %p240 = scmp.ne.s32.totalorder %s231, %s232
      %p241 = scmp.eq.s32.totalorder %s25, 0
      %p242 = por %p240, %p241
      %p243 = scmp.ne.s32.totalorder %s231, %s232
      %p244 = scmp.eq.s32.totalorder %s26, 3
      %p245 = por %p243, %p244
      %p247 = scmp.ne.s32.totalorder %s232, %s246
      %p248 = scmp.eq.s32.totalorder %s26, 0
      %p249 = por %p247, %p248
      %s251 = sadd.s32 %s250, 1
      %p254 = scmp.eq.s32.totalorder %s20, 3
      %p255 = scmp.ne.s32.totalorder %s250, %s252
      %p256 = scmp.eq.s32.totalorder %s20, 0
      %p257 = por %p255, %p256
      %p258 = scmp.ne.s32.totalorder %s250, %s252
      %p259 = scmp.eq.s32.totalorder %s25, 3
      %p260 = por %p258, %p259
      %p261 = scmp.ne.s32.totalorder %s252, %s253
      %p262 = scmp.eq.s32.totalorder %s25, 0
      %p263 = por %p261, %p262
      %p264 = scmp.ne.s32.totalorder %s252, %s253
      %p265 = scmp.eq.s32.totalorder %s26, 3
      %p266 = por %p264, %p265
      %p268 = scmp.ne.s32.totalorder %s253, %s267
      %p269 = scmp.eq.s32.totalorder %s26, 0
      %p270 = por %p268, %p269
      %s272 = sadd.s32 %s271, 1
      %p275 = scmp.eq.s32.totalorder %s20, 3
      %p276 = scmp.ne.s32.totalorder %s271, %s273
      %p277 = scmp.eq.s32.totalorder %s20, 0
      %p278 = por %p276, %p277
      %p279 = scmp.ne.s32.totalorder %s271, %s273
      %p280 = scmp.eq.s32.totalorder %s25, 3
      %p281 = por %p279, %p280
      %p282 = scmp.ne.s32.totalorder %s273, %s274
      %p283 = scmp.eq.s32.totalorder %s25, 0
      %p284 = por %p282, %p283
      %p285 = scmp.ne.s32.totalorder %s273, %s274
      %p286 = scmp.eq.s32.totalorder %s26, 3
      %p287 = por %p285, %p286
      %p289 = scmp.ne.s32.totalorder %s274, %s288
      %p290 = scmp.eq.s32.totalorder %s26, 0
      %p291 = por %p289, %p290
      %s292 = ssub.s32 %s27, %s46
      %s293 = ssub.s32 %s28, %s42
      %s294 = sor.u32 %s292, %s293
      %p295 = scmp.eq.s32.totalorder %s294, 0
      %s297 = sadd.s32 %s296, 1
      %s298 = scalar_select %p295, %s296, %s297
      %p301 = pneg %p295
      %p302 = scmp.eq.s32.totalorder %s20, 3
      %p303 = por %p301, %p302
      %p304 = scmp.ne.s32.totalorder %s296, %s299
      %p305 = scmp.eq.s32.totalorder %s20, 0
      %p306 = por %p304, %p305
      %p307 = scmp.ne.s32.totalorder %s296, %s299
      %p308 = scmp.eq.s32.totalorder %s25, 3
      %p309 = por %p307, %p308
      %p310 = scmp.ne.s32.totalorder %s299, %s300
      %p311 = scmp.eq.s32.totalorder %s25, 0
      %p312 = por %p310, %p311
      %p313 = scmp.ne.s32.totalorder %s299, %s300
      %p314 = scmp.eq.s32.totalorder %s26, 3
      %p315 = por %p313, %p314
      %p317 = scmp.ne.s32.totalorder %s300, %s316
      %p318 = scmp.eq.s32.totalorder %s26, 0
      %p319 = por %p317, %p318
      %p320 = scmp.le.s32.totalorder 1, %s20
      %p321 = scmp.lt.s32.totalorder %s20, 5
      %p322 = pnand %p320, %p321
      %p323 = pneg %p322
      // Predicated region
      $region9: #{tpu_custom_call.1} parent=5 // pred_check
        _
      $region10: #{tpu_custom_call.1} parent=5 // pred_check_branch
        %325 = sbr.rel (%p322) target = $region12
      $region11: #{tpu_custom_call.1} parent=5 // pred_region
        %s326 = ssub.s32 %s20, 1
        // Predicated region
        $region13: #{tpu_custom_call.1} parent=11 // pred_check
          %p327 = pneg %p116
        $region14: #{tpu_custom_call.1} parent=11 // pred_check_branch
          %329 = sbr.rel (%p327) target = $region16
        $region15: #{tpu_custom_call.1} parent=11 // pred_region
          _
        $region16: #{tpu_custom_call.1} parent=11 // pred_fallthru
          _
        // Predicated region
        $region17: #{tpu_custom_call.1} parent=11 // pred_check
          %p330 = pneg %p137
        $region18: #{tpu_custom_call.1} parent=11 // pred_check_branch
          %332 = sbr.rel (%p330) target = $region20
        $region19: #{tpu_custom_call.1} parent=11 // pred_region
          _
        $region20: #{tpu_custom_call.1} parent=11 // pred_fallthru
          _
        // Predicated region
        $region21: #{tpu_custom_call.1} parent=11 // pred_check
          %p333 = pneg %p158
        $region22: #{tpu_custom_call.1} parent=11 // pred_check_branch
          %335 = sbr.rel (%p333) target = $region24
        $region23: #{tpu_custom_call.1} parent=11 // pred_region
          _
        $region24: #{tpu_custom_call.1} parent=11 // pred_fallthru
          _
        // Predicated region
        $region25: #{tpu_custom_call.1} parent=11 // pred_check
          %p336 = pneg %p179
        $region26: #{tpu_custom_call.1} parent=11 // pred_check_branch
          %338 = sbr.rel (%p336) target = $region28
        $region27: #{tpu_custom_call.1} parent=11 // pred_region
          _
        $region28: #{tpu_custom_call.1} parent=11 // pred_fallthru
          _
        // Predicated region
        $region29: #{tpu_custom_call.1} parent=11 // pred_check
          %p339 = pneg %p200
        $region30: #{tpu_custom_call.1} parent=11 // pred_check_branch
          %341 = sbr.rel (%p339) target = $region32
        $region31: #{tpu_custom_call.1} parent=11 // pred_region
          _
        $region32: #{tpu_custom_call.1} parent=11 // pred_fallthru
          _
        // Predicated region
        $region33: #{tpu_custom_call.1} parent=11 // pred_check
          %p342 = pneg %p221
        $region34: #{tpu_custom_call.1} parent=11 // pred_check_branch
          %344 = sbr.rel (%p342) target = $region36
        $region35: #{tpu_custom_call.1} parent=11 // pred_region
          _
        $region36: #{tpu_custom_call.1} parent=11 // pred_fallthru
          _
        // Predicated region
        $region37: #{tpu_custom_call.1} parent=11 // pred_check
          %p345 = pneg %p242
        $region38: #{tpu_custom_call.1} parent=11 // pred_check_branch
          %347 = sbr.rel (%p345) target = $region40
        $region39: #{tpu_custom_call.1} parent=11 // pred_region
          _
        $region40: #{tpu_custom_call.1} parent=11 // pred_fallthru
          _
        // Predicated region
        $region41: #{tpu_custom_call.1} parent=11 // pred_check
          %p348 = pneg %p263
        $region42: #{tpu_custom_call.1} parent=11 // pred_check_branch
          %350 = sbr.rel (%p348) target = $region44
        $region43: #{tpu_custom_call.1} parent=11 // pred_region
          _
        $region44: #{tpu_custom_call.1} parent=11 // pred_fallthru
          _
        // Predicated region
        $region45: #{tpu_custom_call.1} parent=11 // pred_check
          %p351 = pneg %p284
        $region46: #{tpu_custom_call.1} parent=11 // pred_check_branch
          %353 = sbr.rel (%p351) target = $region48
        $region47: #{tpu_custom_call.1} parent=11 // pred_region
          _
        $region48: #{tpu_custom_call.1} parent=11 // pred_fallthru
          _
      $region12: #{tpu_custom_call.1} parent=5 // pred_fallthru
        _
      %p354 = scmp.lt.s32.totalorder %s20, 4
      // Predicated region
      $region49: #{tpu_custom_call.1} parent=5 // pred_check
        %p355 = pneg %p354
      $region50: #{tpu_custom_call.1} parent=5 // pred_check_branch
        %357 = sbr.rel (%p355) target = $region52
      $region51: #{tpu_custom_call.1} parent=5 // pred_region
        // Predicated region
        $region53: #{tpu_custom_call.1} parent=51 // pred_check
          %p358 = pneg %p61
        $region54: #{tpu_custom_call.1} parent=51 // pred_check_branch
          %360 = sbr.rel (%p358) target = $region56
        $region55: #{tpu_custom_call.1} parent=51 // pred_region
          %s361 = smul.u32 16, %s29
          %p362 = scmp.lt.s32.totalorder %s27, 1
          %s363 = scalar_select %p362, %s27, 1
          %p364 = scmp.lt.s32.totalorder %s361, 31
          %s365 = scalar_select %p364, %s361, 31
          %s366 = smul.addr %s363, 32
          %s367 = sadd.s32 %s365, %s366
          %s368 = smul.addr %s367, 4
          %s369 = scalar_lea.vmem %s0, %s368
          %s370 = smul.u32 16, %s29
        $region56: #{tpu_custom_call.1} parent=51 // pred_fallthru
          _
        // Predicated region
        $region57: #{tpu_custom_call.1} parent=51 // pred_check
          %p371 = pneg %p89
        $region58: #{tpu_custom_call.1} parent=51 // pred_check_branch
          %373 = sbr.rel (%p371) target = $region60
        $region59: #{tpu_custom_call.1} parent=51 // pred_region
          %s374 = smul.u32 8, %s28
          %p375 = scmp.lt.s32.totalorder %s27, 1
          %s376 = scalar_select %p375, %s27, 1
          %p377 = scmp.lt.s32.totalorder %s374, 7
          %s378 = scalar_select %p377, %s374, 7
          %s379 = smul.addr %s376, 8
          %s380 = sadd.s32 %s378, %s379
          %s381 = smul.addr %s380, 4
          %s382 = scalar_lea.vmem %s1, %s381
          %s383 = smul.u32 8, %s28
        $region60: #{tpu_custom_call.1} parent=51 // pred_fallthru
          _
      $region52: #{tpu_custom_call.1} parent=5 // pred_fallthru
        _
      %p384 = scmp.le.s32.totalorder 1, %s20
      %p385 = scmp.lt.s32.totalorder %s20, 5
      %p386 = pnand %p384, %p385
      %p387 = pneg %p386
      // Predicated region
      $region61: #{tpu_custom_call.1} parent=5 // pred_check
        _
      $region62: #{tpu_custom_call.1} parent=5 // pred_check_branch
        %389 = sbr.rel (%p386) target = $region64
      $region63: #{tpu_custom_call.1} parent=5 // pred_region
        %s390 = ssub.s32 %s20, 1
        %s391 = smul.u32 16, %s32
        %p392 = scmp.lt.s32.totalorder %s30, 1
        %s393 = scalar_select %p392, %s30, 1
        %p394 = scmp.lt.s32.totalorder %s391, 31
        %s395 = scalar_select %p394, %s391, 31
        %s396 = smul.addr %s393, 32
        %s397 = sadd.s32 %s395, %s396
        %s398 = smul.addr %s397, 4
        %s399 = scalar_lea.vmem %s0, %s398
        %p400 = pneg %p67
        %p401 = pneg %p64
        %s402 = smul.u32 8, %s31
        %p403 = scmp.lt.s32.totalorder %s30, 1
        %s404 = scalar_select %p403, %s30, 1
        %p405 = scmp.lt.s32.totalorder %s402, 7
        %s406 = scalar_select %p405, %s402, 7
        %s407 = smul.addr %s404, 8
        %s408 = sadd.s32 %s406, %s407
        %s409 = smul.addr %s408, 4
        %s410 = scalar_lea.vmem %s1, %s409
        %p411 = pneg %p95
        %p412 = pneg %p92
        %p413 = pneg %p116
        %p414 = pneg %p113
        %p415 = pneg %p137
        %p416 = pneg %p134
        %p417 = pneg %p158
        %p418 = pneg %p155
        %p419 = pneg %p179
        %p420 = pneg %p176
        %p421 = pneg %p200
        %p422 = pneg %p197
        %p423 = pneg %p221
        %p424 = pneg %p218
        %p425 = pneg %p242
        %p426 = pneg %p239
        %p427 = pneg %p263
        %p428 = pneg %p260
        %p429 = pneg %p284
        %p430 = pneg %p281
        %p431 = pneg %p312
        %p432 = pneg %p309
        %s433 = sand.u32 %s299, 1
        %s434 = scalar_lea.sflag [#allocation7], %s433
        %s435 = sand.u32 %s299, 1
        %s436 = smul.addr %s435, 32
        %s437 = scalar_lea.vmem [#allocation6], %s436
        %s438 = smul.u32 16, %s32
        %p439 = scmp.lt.s32.totalorder %s30, 1
        %s440 = scalar_select %p439, %s30, 1
        %p441 = scmp.lt.s32.totalorder %s438, 31
        %s442 = scalar_select %p441, %s438, 31
        %s443 = smul.addr %s440, 32
        %s444 = sadd.s32 %s442, %s443
        %s445 = smul.addr %s444, 4
        %s446 = scalar_lea.vmem %s0, %s445
        %s447 = smul.u32 16, %s32
        %s448 = smul.u32 8, %s31
        %p449 = scmp.lt.s32.totalorder %s30, 1
        %s450 = scalar_select %p449, %s30, 1
        %p451 = scmp.lt.s32.totalorder %s448, 7
        %s452 = scalar_select %p451, %s448, 7
        %s453 = smul.addr %s450, 8
        %s454 = sadd.s32 %s452, %s453
        %s455 = smul.addr %s454, 4
        %s456 = scalar_lea.vmem %s1, %s455
        %s457 = smul.u32 8, %s31
        %s458 = smul.u32 8, %s31
        %v460 = vld [vmem:[%s2] sm:$0x1]
        %v461 = vld [vmem:[%s2 + $0x1] sm:$0x1]
        %v462 = vld [vmem:[%s2 + $0x2] sm:$0x1]
        %v463 = vld [vmem:[%s2 + $0x3] sm:$0x1]
        %v464 = vadd.f32 %v463, 1e-05
        %v465 = vrsqrt.pop %v464
        %v466 = vmul.f32 %v460, %v465
        %v467 = vmul.f32 %v462, %v466
        %v468 = vsub.f32 %v461, %v467
        %p469 = scmp.eq.s32.totalorder %s32, 0
        // Predicated region
        $region65: #{tpu_custom_call.1} parent=63 // pred_check
          %p470 = pneg %p469
        $region66: #{tpu_custom_call.1} parent=63 // pred_check_branch
          %472 = sbr.rel (%p470) target = $region68
        $region67: #{tpu_custom_call.1} parent=63 // pred_region
          %v473 = vld [vmem:[%s456] sm:$0xf]
          %v474 = vld [vmem:[%s456 + $0x4] sm:$0xf]
          %v475 = vld [vmem:[%s456 + $0x8] sm:$0xf]
          %v476 = vld [vmem:[%s456 + $0xc] sm:$0xf]
          %v477 = vld [vmem:[%s456 + $0x10] sm:$0xf]
          %v478 = vld [vmem:[%s456 + $0x14] sm:$0xf]
          %v479 = vld [vmem:[%s456 + $0x18] sm:$0xf]
          %v480 = vld [vmem:[%s456 + $0x1c] sm:$0xf]
          %v481 = vunpack.c.l.bf16 %v473
          %v482 = vunpack.c.l.bf16 %v474
          %v483 = vunpack.c.l.bf16 %v475
          %v484 = vunpack.c.l.bf16 %v476
          %v485 = vunpack.c.l.bf16 %v477
          %v486 = vunpack.c.l.bf16 %v478
          %v487 = vunpack.c.l.bf16 %v479
          %v488 = vunpack.c.l.bf16 %v480
          %v489 = vlaneseq
          %v490 = vshrl.u32 %v489, 7
          %v491 = vsub.s32 0, %v490
          %v492 = vrot.slane %v466, %v491
          %v493 = vmul.f32 %v481, %v492
          %v494 = vmul.f32 %v482, %v492
          %v495 = vmul.f32 %v483, %v492
          %v496 = vmul.f32 %v484, %v492
          %v497 = vmul.f32 %v485, %v492
          %v498 = vmul.f32 %v486, %v492
          %v499 = vmul.f32 %v487, %v492
          %v500 = vmul.f32 %v488, %v492
          %v501 = vlaneseq
          %v502 = vshrl.u32 %v501, 7
          %v503 = vsub.s32 0, %v502
          %v504 = vrot.slane %v468, %v503
          %v505 = vadd.f32 %v493, %v504
          %v506 = vadd.f32 %v494, %v504
          %v507 = vadd.f32 %v495, %v504
          %v508 = vadd.f32 %v496, %v504
          %v509 = vadd.f32 %v497, %v504
          %v510 = vadd.f32 %v498, %v504
          %v511 = vadd.f32 %v499, %v504
          %v512 = vadd.f32 %v500, %v504
          %v513 = vmax.f32 %v505, 0.0
          %v514 = vmax.f32 %v506, 0.0
          %v515 = vmax.f32 %v507, 0.0
          %v516 = vmax.f32 %v508, 0.0
          %v517 = vmax.f32 %v509, 0.0
          %v518 = vmax.f32 %v510, 0.0
          %v519 = vmax.f32 %v511, 0.0
          %v520 = vmax.f32 %v512, 0.0
          %v521 = vpack.c.bf16 %v514, %v513
          %v522 = vpack.c.bf16 %v516, %v515
          %v523 = vpack.c.bf16 %v518, %v517
          %v524 = vpack.c.bf16 %v520, %v519
          %v525 = vld [vmem:[%s3] sm:$0x3]
          %v526 = vld [vmem:[%s8 + $0x1] sm:$0x1]
          %v527 = vlaneseq
          %v528 = vshrl.u32 %v527, 7
          %v529 = vsub.s32 0, %v528
          %v530 = vrot.slane %v526, %v529
          %vm531 = vcmask 31744
          %v533 = vsel %vm531, %v521, 0
          %v536 = vsel %vm531, %v522, 0
          %v539 = vsel %vm531, %v523, 0
          %v542 = vsel %vm531, %v524, 0
          %vm544 = vcmask 1041408
          %v546 = vsel %vm544, %v525, 0
          %548 = vmatprep.subr.bf16.mxu0 0
          %549 = vmatpush1.bf16.msra.mxu0 %v546
          %550 = vmatprep.subr.bf16.mxu0 0
          %551 = vmatpush1.bf16.msra.mxu0 0
          %552 = vmatprep.subr.bf16.mxu0 0
          %553 = vmatpush1.bf16.msra.mxu0 0
          %554 = vmatprep.subr.bf16.mxu0 0
          %555 = vmatpush1.bf16.msra.mxu0 0
          %556 = vmatprep.subr.bf16.mxu0 0
          %557 = vmatpush1.bf16.msra.mxu0 0
          %558 = vmatprep.subr.bf16.mxu0 0
          %559 = vmatpush1.bf16.msra.mxu0 0
          %560 = vmatprep.subr.bf16.mxu0 0
          %561 = vmatpush1.bf16.msra.mxu0 0
          %562 = vmatprep.subr.bf16.mxu0 0
          %563 = vmatpush1.bf16.msra.mxu0 0
          %564 = vmatprep.subr.bf16.mxu0 0
          %565 = vmatpush1.bf16.msra.mxu0 0
          %566 = vmatprep.subr.bf16.mxu0 0
          %567 = vmatpush1.bf16.msra.mxu0 0
          %568 = vmatprep.subr.bf16.mxu0 0
          %569 = vmatpush1.bf16.msra.mxu0 0
          %570 = vmatprep.subr.bf16.mxu0 0
          %571 = vmatpush1.bf16.msra.mxu0 0
          %572 = vmatprep.subr.bf16.mxu0 0
          %573 = vmatpush1.bf16.msra.mxu0 0
          %574 = vmatprep.subr.bf16.mxu0 0
          %575 = vmatpush1.bf16.msra.mxu0 0
          %576 = vmatprep.subr.bf16.mxu0 0
          %577 = vmatpush1.bf16.msra.mxu0 0
          %578 = vmatprep.subr.bf16.mxu0 0
          %579 = vmatpush1.bf16.msra.mxu0 0
          %580 = vmatprep.mubr.bf16.mxu0 0
          %581 = vmatmul.mubr.bf16.gmra.mrb[0].mxu0 %v533
          %v582 = vpop.f32.mrb[0].mxu0
          %v583 = vadd.f32 %v530, %v582
          %v584 = vpop.f32.mrb[0].mxu0
          %v585 = vpop.f32.mrb[0].mxu0
          %v586 = vadd.f32 %v530, %v585
          %v587 = vpop.f32.mrb[0].mxu0
          %588 = vmatprep.mubr.bf16.mxu0 0
          %589 = vmatmul.mubr.bf16.gmra.mrb[0].mxu0 %v536
          %v590 = vpop.f32.mrb[0].mxu0
          %v591 = vadd.f32 %v530, %v590
          %v592 = vpop.f32.mrb[0].mxu0
          %v593 = vpop.f32.mrb[0].mxu0
          %v594 = vadd.f32 %v530, %v593
          %v595 = vpop.f32.mrb[0].mxu0
          %596 = vmatprep.mubr.bf16.mxu0 0
          %597 = vmatmul.mubr.bf16.gmra.mrb[0].mxu0 %v539
          %v598 = vpop.f32.mrb[0].mxu0
          %v599 = vadd.f32 %v530, %v598
          %v600 = vpop.f32.mrb[0].mxu0
          %v601 = vpop.f32.mrb[0].mxu0
          %v602 = vadd.f32 %v530, %v601
          %v603 = vpop.f32.mrb[0].mxu0
          %604 = vmatprep.mubr.bf16.mxu0 0
          %605 = vmatmul.mubr.bf16.gmra.mrb[0].mxu0 %v542
          %v606 = vpop.f32.mrb[0].mxu0
          %v607 = vadd.f32 %v530, %v606
          %v608 = vpop.f32.mrb[0].mxu0
          %v609 = vpop.f32.mrb[0].mxu0
          %v610 = vadd.f32 %v530, %v609
          %v611 = vpop.f32.mrb[0].mxu0
          %612 = vdwg.mxu0
          %v613 = vpack.c.bf16 %v586, %v583
          %v614 = vpack.c.bf16 %v594, %v591
          %v615 = vpack.c.bf16 %v602, %v599
          %v616 = vpack.c.bf16 %v610, %v607
          %vm617 = vcmask 261120
          %618 = vst.msk [vmem:[#allocation2] sm:$0xff] %vm617, %v613
          %619 = vst.msk [vmem:[#allocation2 + $0x8] sm:$0xff] %vm617, %v614
          %620 = vst.msk [vmem:[#allocation2 + $0x10] sm:$0xff] %vm617, %v615
          %621 = vst.msk [vmem:[#allocation2 + $0x18] sm:$0xff] %vm617, %v616
          %vm622 = vcmask 7168
          %623 = vst.msk [vmem:[#allocation3] sm:$0xff] %vm622, -inf
          %624 = vst.msk [vmem:[#allocation3 + $0x8] sm:$0xff] %vm622, -inf
          %625 = vst.msk [vmem:[#allocation3 + $0x10] sm:$0xff] %vm622, -inf
          %626 = vst.msk [vmem:[#allocation3 + $0x18] sm:$0xff] %vm622, -inf
          %627 = vst.msk [vmem:[#allocation3 + $0x20] sm:$0xff] %vm622, -inf
          %628 = vst.msk [vmem:[#allocation3 + $0x28] sm:$0xff] %vm622, -inf
          %629 = vst.msk [vmem:[#allocation3 + $0x30] sm:$0xff] %vm622, -inf
          %630 = vst.msk [vmem:[#allocation3 + $0x38] sm:$0xff] %vm622, -inf
          %631 = vst.msk [vmem:[#allocation3 + $0x40] sm:$0xff] %vm622, -inf
          %632 = vst.msk [vmem:[#allocation3 + $0x48] sm:$0xff] %vm622, -inf
          %633 = vst.msk [vmem:[#allocation3 + $0x50] sm:$0xff] %vm622, -inf
          %634 = vst.msk [vmem:[#allocation3 + $0x58] sm:$0xff] %vm622, -inf
          %635 = vst.msk [vmem:[#allocation3 + $0x60] sm:$0xff] %vm622, -inf
          %636 = vst.msk [vmem:[#allocation3 + $0x68] sm:$0xff] %vm622, -inf
          %637 = vst.msk [vmem:[#allocation3 + $0x70] sm:$0xff] %vm622, -inf
          %638 = vst.msk [vmem:[#allocation3 + $0x78] sm:$0xff] %vm622, -inf
          %639 = vst.msk [vmem:[#allocation4] sm:$0xff] %vm622, 0.0
          %640 = vst.msk [vmem:[#allocation4 + $0x8] sm:$0xff] %vm622, 0.0
          %641 = vst.msk [vmem:[#allocation4 + $0x10] sm:$0xff] %vm622, 0.0
          %642 = vst.msk [vmem:[#allocation4 + $0x18] sm:$0xff] %vm622, 0.0
          %643 = vst.msk [vmem:[#allocation4 + $0x20] sm:$0xff] %vm622, 0.0
          %644 = vst.msk [vmem:[#allocation4 + $0x28] sm:$0xff] %vm622, 0.0
          %645 = vst.msk [vmem:[#allocation4 + $0x30] sm:$0xff] %vm622, 0.0
          %646 = vst.msk [vmem:[#allocation4 + $0x38] sm:$0xff] %vm622, 0.0
          %647 = vst.msk [vmem:[#allocation4 + $0x40] sm:$0xff] %vm622, 0.0
          %648 = vst.msk [vmem:[#allocation4 + $0x48] sm:$0xff] %vm622, 0.0
          %649 = vst.msk [vmem:[#allocation4 + $0x50] sm:$0xff] %vm622, 0.0
          %650 = vst.msk [vmem:[#allocation4 + $0x58] sm:$0xff] %vm622, 0.0
          %651 = vst.msk [vmem:[#allocation4 + $0x60] sm:$0xff] %vm622, 0.0
          %652 = vst.msk [vmem:[#allocation4 + $0x68] sm:$0xff] %vm622, 0.0
          %653 = vst.msk [vmem:[#allocation4 + $0x70] sm:$0xff] %vm622, 0.0
          %654 = vst.msk [vmem:[#allocation4 + $0x78] sm:$0xff] %vm622, 0.0
          %655 = vst.msk [vmem:[#allocation5] sm:$0xff] %vm617, 0.0
          %656 = vst.msk [vmem:[#allocation5 + $0x8] sm:$0xff] %vm617, 0.0
          %657 = vst.msk [vmem:[#allocation5 + $0x10] sm:$0xff] %vm617, 0.0
          %658 = vst.msk [vmem:[#allocation5 + $0x18] sm:$0xff] %vm617, 0.0
          %659 = vst.msk [vmem:[#allocation5 + $0x20] sm:$0xff] %vm617, 0.0
          %660 = vst.msk [vmem:[#allocation5 + $0x28] sm:$0xff] %vm617, 0.0
          %661 = vst.msk [vmem:[#allocation5 + $0x30] sm:$0xff] %vm617, 0.0
          %662 = vst.msk [vmem:[#allocation5 + $0x38] sm:$0xff] %vm617, 0.0
        $region68: #{tpu_custom_call.1} parent=63 // pred_fallthru
          _
        %v663 = vld [vmem:[%s446] sm:$0xf]
        %v664 = vld [vmem:[%s446 + $0x4] sm:$0xf]
        %v665 = vld [vmem:[%s446 + $0x8] sm:$0xf]
        %v666 = vld [vmem:[%s446 + $0xc] sm:$0xf]
        %v667 = vld [vmem:[%s446 + $0x10] sm:$0xf]
        %v668 = vld [vmem:[%s446 + $0x14] sm:$0xf]
        %v669 = vld [vmem:[%s446 + $0x18] sm:$0xf]
        %v670 = vld [vmem:[%s446 + $0x1c] sm:$0xf]
        %v671 = vld [vmem:[%s446 + $0x20] sm:$0xf]
        %v672 = vld [vmem:[%s446 + $0x24] sm:$0xf]
        %v673 = vld [vmem:[%s446 + $0x28] sm:$0xf]
        %v674 = vld [vmem:[%s446 + $0x2c] sm:$0xf]
        %v675 = vld [vmem:[%s446 + $0x30] sm:$0xf]
        %v676 = vld [vmem:[%s446 + $0x34] sm:$0xf]
        %v677 = vld [vmem:[%s446 + $0x38] sm:$0xf]
        %v678 = vld [vmem:[%s446 + $0x3c] sm:$0xf]
        %v679 = vunpack.c.l.bf16 %v663
        %v680 = vunpack.c.l.bf16 %v664
        %v681 = vunpack.c.l.bf16 %v665
        %v682 = vunpack.c.l.bf16 %v666
        %v683 = vunpack.c.l.bf16 %v667
        %v684 = vunpack.c.l.bf16 %v668
        %v685 = vunpack.c.l.bf16 %v669
        %v686 = vunpack.c.l.bf16 %v670
        %v687 = vunpack.c.l.bf16 %v671
        %v688 = vunpack.c.l.bf16 %v672
        %v689 = vunpack.c.l.bf16 %v673
        %v690 = vunpack.c.l.bf16 %v674
        %v691 = vunpack.c.l.bf16 %v675
        %v692 = vunpack.c.l.bf16 %v676
        %v693 = vunpack.c.l.bf16 %v677
        %v694 = vunpack.c.l.bf16 %v678
        %v695 = vlaneseq
        %v696 = vshrl.u32 %v695, 7
        %v697 = vsub.s32 0, %v696
        %v698 = vrot.slane %v466, %v697
        %v699 = vmul.f32 %v679, %v698
        %v700 = vmul.f32 %v680, %v698
        %v701 = vmul.f32 %v681, %v698
        %v702 = vmul.f32 %v682, %v698
        %v703 = vmul.f32 %v683, %v698
        %v704 = vmul.f32 %v684, %v698
        %v705 = vmul.f32 %v685, %v698
        %v706 = vmul.f32 %v686, %v698
        %v707 = vmul.f32 %v687, %v698
        %v708 = vmul.f32 %v688, %v698
        %v709 = vmul.f32 %v689, %v698
        %v710 = vmul.f32 %v690, %v698
        %v711 = vmul.f32 %v691, %v698
        %v712 = vmul.f32 %v692, %v698
        %v713 = vmul.f32 %v693, %v698
        %v714 = vmul.f32 %v694, %v698
        %v715 = vlaneseq
        %v716 = vshrl.u32 %v715, 7
        %v717 = vsub.s32 0, %v716
        %v718 = vrot.slane %v468, %v717
        %v719 = vadd.f32 %v699, %v718
        %v720 = vadd.f32 %v700, %v718
        %v721 = vadd.f32 %v701, %v718
        %v722 = vadd.f32 %v702, %v718
        %v723 = vadd.f32 %v703, %v718
        %v724 = vadd.f32 %v704, %v718
        %v725 = vadd.f32 %v705, %v718
        %v726 = vadd.f32 %v706, %v718
        %v727 = vadd.f32 %v707, %v718
        %v728 = vadd.f32 %v708, %v718
        %v729 = vadd.f32 %v709, %v718
        %v730 = vadd.f32 %v710, %v718
        %v731 = vadd.f32 %v711, %v718
        %v732 = vadd.f32 %v712, %v718
        %v733 = vadd.f32 %v713, %v718
        %v734 = vadd.f32 %v714, %v718
        %v735 = vmax.f32 %v719, 0.0
        %v736 = vmax.f32 %v720, 0.0
        %v737 = vmax.f32 %v721, 0.0
        %v738 = vmax.f32 %v722, 0.0
        %v739 = vmax.f32 %v723, 0.0
        %v740 = vmax.f32 %v724, 0.0
        %v741 = vmax.f32 %v725, 0.0
        %v742 = vmax.f32 %v726, 0.0
        %v743 = vmax.f32 %v727, 0.0
        %v744 = vmax.f32 %v728, 0.0
        %v745 = vmax.f32 %v729, 0.0
        %v746 = vmax.f32 %v730, 0.0
        %v747 = vmax.f32 %v731, 0.0
        %v748 = vmax.f32 %v732, 0.0
        %v749 = vmax.f32 %v733, 0.0
        %v750 = vmax.f32 %v734, 0.0
        %v751 = vpack.c.bf16 %v736, %v735
        %v752 = vpack.c.bf16 %v738, %v737
        %v753 = vpack.c.bf16 %v740, %v739
        %v754 = vpack.c.bf16 %v742, %v741
        %v755 = vpack.c.bf16 %v744, %v743
        %v756 = vpack.c.bf16 %v746, %v745
        %v757 = vpack.c.bf16 %v748, %v747
        %v758 = vpack.c.bf16 %v750, %v749
        %v759 = vld [vmem:[%s4] sm:$0x3]
        %v760 = vld [vmem:[%s8] sm:$0x1]
        %v761 = vlaneseq
        %v762 = vshrl.u32 %v761, 7
        %v763 = vsub.s32 0, %v762
        %v764 = vrot.slane %v760, %v763
        %vm765 = vcmask 31744
        %v767 = vsel %vm765, %v751, 0
        %v770 = vsel %vm765, %v752, 0
        %v773 = vsel %vm765, %v753, 0
        %v776 = vsel %vm765, %v754, 0
        %v779 = vsel %vm765, %v755, 0
        %v782 = vsel %vm765, %v756, 0
        %v785 = vsel %vm765, %v757, 0
        %v788 = vsel %vm765, %v758, 0
        %vm790 = vcmask 1041408
        %v792 = vsel %vm790, %v759, 0
        %794 = vmatprep.subr.bf16.mxu0 0
        %795 = vmatpush1.bf16.msra.mxu0 %v792
        %796 = vmatprep.subr.bf16.mxu0 0
        %797 = vmatpush1.bf16.msra.mxu0 0
        %798 = vmatprep.subr.bf16.mxu0 0
        %799 = vmatpush1.bf16.msra.mxu0 0
        %800 = vmatprep.subr.bf16.mxu0 0
        %801 = vmatpush1.bf16.msra.mxu0 0
        %802 = vmatprep.subr.bf16.mxu0 0
        %803 = vmatpush1.bf16.msra.mxu0 0
        %804 = vmatprep.subr.bf16.mxu0 0
        %805 = vmatpush1.bf16.msra.mxu0 0
        %806 = vmatprep.subr.bf16.mxu0 0
        %807 = vmatpush1.bf16.msra.mxu0 0
        %808 = vmatprep.subr.bf16.mxu0 0
        %809 = vmatpush1.bf16.msra.mxu0 0
        %810 = vmatprep.subr.bf16.mxu0 0
        %811 = vmatpush1.bf16.msra.mxu0 0
        %812 = vmatprep.subr.bf16.mxu0 0
        %813 = vmatpush1.bf16.msra.mxu0 0
        %814 = vmatprep.subr.bf16.mxu0 0
        %815 = vmatpush1.bf16.msra.mxu0 0
        %816 = vmatprep.subr.bf16.mxu0 0
        %817 = vmatpush1.bf16.msra.mxu0 0
        %818 = vmatprep.subr.bf16.mxu0 0
        %819 = vmatpush1.bf16.msra.mxu0 0
        %820 = vmatprep.subr.bf16.mxu0 0
        %821 = vmatpush1.bf16.msra.mxu0 0
        %822 = vmatprep.subr.bf16.mxu0 0
        %823 = vmatpush1.bf16.msra.mxu0 0
        %824 = vmatprep.subr.bf16.mxu0 0
        %825 = vmatpush1.bf16.msra.mxu0 0
        %826 = vmatprep.mubr.bf16.mxu0 0
        %827 = vmatmul.mubr.bf16.gmra.mrb[0].mxu0 %v767
        %v828 = vpop.f32.mrb[0].mxu0
        %v829 = vadd.f32 %v764, %v828
        %v830 = vpop.f32.mrb[0].mxu0
        %v831 = vpop.f32.mrb[0].mxu0
        %v832 = vadd.f32 %v764, %v831
        %v833 = vpop.f32.mrb[0].mxu0
        %834 = vmatprep.mubr.bf16.mxu0 0
        %835 = vmatmul.mubr.bf16.gmra.mrb[0].mxu0 %v770
        %v836 = vpop.f32.mrb[0].mxu0
        %v837 = vadd.f32 %v764, %v836
        %v838 = vpop.f32.mrb[0].mxu0
        %v839 = vpop.f32.mrb[0].mxu0
        %v840 = vadd.f32 %v764, %v839
        %v841 = vpop.f32.mrb[0].mxu0
        %842 = vmatprep.mubr.bf16.mxu0 0
        %843 = vmatmul.mubr.bf16.gmra.mrb[0].mxu0 %v773
        %v844 = vpop.f32.mrb[0].mxu0
        %v845 = vadd.f32 %v764, %v844
        %v846 = vpop.f32.mrb[0].mxu0
        %v847 = vpop.f32.mrb[0].mxu0
        %v848 = vadd.f32 %v764, %v847
        %v849 = vpop.f32.mrb[0].mxu0
        %850 = vmatprep.mubr.bf16.mxu0 0
        %851 = vmatmul.mubr.bf16.gmra.mrb[0].mxu0 %v776
        %v852 = vpop.f32.mrb[0].mxu0
        %v853 = vadd.f32 %v764, %v852
        %v854 = vpop.f32.mrb[0].mxu0
        %v855 = vpop.f32.mrb[0].mxu0
        %v856 = vadd.f32 %v764, %v855
        %v857 = vpop.f32.mrb[0].mxu0
        %858 = vmatprep.mubr.bf16.mxu0 0
        %859 = vmatmul.mubr.bf16.gmra.mrb[0].mxu0 %v779
        %v860 = vpop.f32.mrb[0].mxu0
        %v861 = vadd.f32 %v764, %v860
        %v862 = vpop.f32.mrb[0].mxu0
        %v863 = vpop.f32.mrb[0].mxu0
        %v864 = vadd.f32 %v764, %v863
        %v865 = vpop.f32.mrb[0].mxu0
        %866 = vmatprep.mubr.bf16.mxu0 0
        %867 = vmatmul.mubr.bf16.gmra.mrb[0].mxu0 %v782
        %v868 = vpop.f32.mrb[0].mxu0
        %v869 = vadd.f32 %v764, %v868
        %v870 = vpop.f32.mrb[0].mxu0
        %v871 = vpop.f32.mrb[0].mxu0
        %v872 = vadd.f32 %v764, %v871
        %v873 = vpop.f32.mrb[0].mxu0
        %874 = vmatprep.mubr.bf16.mxu0 0
        %875 = vmatmul.mubr.bf16.gmra.mrb[0].mxu0 %v785
        %v876 = vpop.f32.mrb[0].mxu0
        %v877 = vadd.f32 %v764, %v876
        %v878 = vpop.f32.mrb[0].mxu0
        %v879 = vpop.f32.mrb[0].mxu0
        %v880 = vadd.f32 %v764, %v879
        %v881 = vpop.f32.mrb[0].mxu0
        %882 = vmatprep.mubr.bf16.mxu0 0
        %883 = vmatmul.mubr.bf16.gmra.mrb[0].mxu0 %v788
        %v884 = vpop.f32.mrb[0].mxu0
        %v885 = vadd.f32 %v764, %v884
        %v886 = vpop.f32.mrb[0].mxu0
        %v887 = vpop.f32.mrb[0].mxu0
        %v888 = vadd.f32 %v764, %v887
        %v889 = vpop.f32.mrb[0].mxu0
        %890 = vdwg.mxu0
        %v891 = vld [vmem:[%s5] sm:$0x3]
        %v892 = vld [vmem:[%s9] sm:$0x1]
        %v894 = vlaneseq
        %v895 = vshrl.u32 %v894, 7
        %v896 = vsub.s32 0, %v895
        %v897 = vrot.slane %v892, %v896
        %v900 = vsel %vm790, %v891, 0
        %902 = vmatprep.subr.bf16.mxu0 0
        %903 = vmatpush1.bf16.msra.mxu0 %v900
        %904 = vmatprep.subr.bf16.mxu0 0
        %905 = vmatpush1.bf16.msra.mxu0 0
        %906 = vmatprep.subr.bf16.mxu0 0
        %907 = vmatpush1.bf16.msra.mxu0 0
        %908 = vmatprep.subr.bf16.mxu0 0
        %909 = vmatpush1.bf16.msra.mxu0 0
        %910 = vmatprep.subr.bf16.mxu0 0
        %911 = vmatpush1.bf16.msra.mxu0 0
        %912 = vmatprep.subr.bf16.mxu0 0
        %913 = vmatpush1.bf16.msra.mxu0 0
        %914 = vmatprep.subr.bf16.mxu0 0
        %915 = vmatpush1.bf16.msra.mxu0 0
        %916 = vmatprep.subr.bf16.mxu0 0
        %917 = vmatpush1.bf16.msra.mxu0 0
        %918 = vmatprep.subr.bf16.mxu0 0
        %919 = vmatpush1.bf16.msra.mxu0 0
        %920 = vmatprep.subr.bf16.mxu0 0
        %921 = vmatpush1.bf16.msra.mxu0 0
        %922 = vmatprep.subr.bf16.mxu0 0
        %923 = vmatpush1.bf16.msra.mxu0 0
        %924 = vmatprep.subr.bf16.mxu0 0
        %925 = vmatpush1.bf16.msra.mxu0 0
        %926 = vmatprep.subr.bf16.mxu0 0
        %927 = vmatpush1.bf16.msra.mxu0 0
        %928 = vmatprep.subr.bf16.mxu0 0
        %929 = vmatpush1.bf16.msra.mxu0 0
        %930 = vmatprep.subr.bf16.mxu0 0
        %931 = vmatpush1.bf16.msra.mxu0 0
        %932 = vmatprep.subr.bf16.mxu0 0
        %933 = vmatpush1.bf16.msra.mxu0 0
        %934 = vmatprep.mubr.bf16.mxu0 0
        %935 = vmatmul.mubr.bf16.gmra.mrb[0].mxu0 %v767
        %v936 = vpop.f32.mrb[0].mxu0
        %v937 = vadd.f32 %v897, %v936
        %v938 = vpop.f32.mrb[0].mxu0
        %v939 = vpop.f32.mrb[0].mxu0
        %v940 = vadd.f32 %v897, %v939
        %v941 = vpop.f32.mrb[0].mxu0
        %942 = vmatprep.mubr.bf16.mxu0 0
        %943 = vmatmul.mubr.bf16.gmra.mrb[0].mxu0 %v770
        %v944 = vpop.f32.mrb[0].mxu0
        %v945 = vadd.f32 %v897, %v944
        %v946 = vpop.f32.mrb[0].mxu0
        %v947 = vpop.f32.mrb[0].mxu0
        %v948 = vadd.f32 %v897, %v947
        %v949 = vpop.f32.mrb[0].mxu0
        %950 = vmatprep.mubr.bf16.mxu0 0
        %951 = vmatmul.mubr.bf16.gmra.mrb[0].mxu0 %v773
        %v952 = vpop.f32.mrb[0].mxu0
        %v953 = vadd.f32 %v897, %v952
        %v954 = vpop.f32.mrb[0].mxu0
        %v955 = vpop.f32.mrb[0].mxu0
        %v956 = vadd.f32 %v897, %v955
        %v957 = vpop.f32.mrb[0].mxu0
        %958 = vmatprep.mubr.bf16.mxu0 0
        %959 = vmatmul.mubr.bf16.gmra.mrb[0].mxu0 %v776
        %v960 = vpop.f32.mrb[0].mxu0
        %v961 = vadd.f32 %v897, %v960
        %v962 = vpop.f32.mrb[0].mxu0
        %v963 = vpop.f32.mrb[0].mxu0
        %v964 = vadd.f32 %v897, %v963
        %v965 = vpop.f32.mrb[0].mxu0
        %966 = vmatprep.mubr.bf16.mxu0 0
        %967 = vmatmul.mubr.bf16.gmra.mrb[0].mxu0 %v779
        %v968 = vpop.f32.mrb[0].mxu0
        %v969 = vadd.f32 %v897, %v968
        %v970 = vpop.f32.mrb[0].mxu0
        %v971 = vpop.f32.mrb[0].mxu0
        %v972 = vadd.f32 %v897, %v971
        %v973 = vpop.f32.mrb[0].mxu0
        %974 = vmatprep.mubr.bf16.mxu0 0
        %975 = vmatmul.mubr.bf16.gmra.mrb[0].mxu0 %v782
        %v976 = vpop.f32.mrb[0].mxu0
        %v977 = vadd.f32 %v897, %v976
        %v978 = vpop.f32.mrb[0].mxu0
        %v979 = vpop.f32.mrb[0].mxu0
        %v980 = vadd.f32 %v897, %v979
        %v981 = vpop.f32.mrb[0].mxu0
        %982 = vmatprep.mubr.bf16.mxu0 0
        %983 = vmatmul.mubr.bf16.gmra.mrb[0].mxu0 %v785
        %v984 = vpop.f32.mrb[0].mxu0
        %v985 = vadd.f32 %v897, %v984
        %v986 = vpop.f32.mrb[0].mxu0
        %v987 = vpop.f32.mrb[0].mxu0
        %v988 = vadd.f32 %v897, %v987
        %v989 = vpop.f32.mrb[0].mxu0
        %990 = vmatprep.mubr.bf16.mxu0 0
        %991 = vmatmul.mubr.bf16.gmra.mrb[0].mxu0 %v788
        %v992 = vpop.f32.mrb[0].mxu0
        %v993 = vadd.f32 %v897, %v992
        %v994 = vpop.f32.mrb[0].mxu0
        %v995 = vpop.f32.mrb[0].mxu0
        %v996 = vadd.f32 %v897, %v995
        %v997 = vpop.f32.mrb[0].mxu0
        %998 = vdwg.mxu0
        %v999 = vpack.c.bf16 %v832, %v829
        %v1000 = vpack.c.bf16 %v840, %v837
        %v1001 = vpack.c.bf16 %v848, %v845
        %v1002 = vpack.c.bf16 %v856, %v853
        %v1003 = vpack.c.bf16 %v864, %v861
        %v1004 = vpack.c.bf16 %v872, %v869
        %v1005 = vpack.c.bf16 %v880, %v877
        %v1006 = vpack.c.bf16 %v888, %v885
        %v1007 = vpack.c.bf16 %v940, %v937
        %v1008 = vpack.c.bf16 %v948, %v945
        %v1009 = vpack.c.bf16 %v956, %v953
        %v1010 = vpack.c.bf16 %v964, %v961
        %v1011 = vpack.c.bf16 %v972, %v969
        %v1012 = vpack.c.bf16 %v980, %v977
        %v1013 = vpack.c.bf16 %v988, %v985
        %v1014 = vpack.c.bf16 %v996, %v993
        %v1015 = vld [vmem:[#allocation2] sm:$0xff]
        %v1016 = vld [vmem:[#allocation2 + $0x8] sm:$0xff]
        %v1017 = vld [vmem:[#allocation2 + $0x10] sm:$0xff]
        %v1018 = vld [vmem:[#allocation2 + $0x18] sm:$0xff]
        %vm1019 = vcmask 130048
        %v1021 = vsel %vm1019, %v1015, 0
        %v1024 = vsel %vm1019, %v1016, 0
        %v1027 = vsel %vm1019, %v1017, 0
        %v1030 = vsel %vm1019, %v1018, 0
        %v1033 = vsel %vm1019, %v999, 0
        %v1036 = vsel %vm1019, %v1000, 0
        %v1039 = vsel %vm1019, %v1001, 0
        %v1042 = vsel %vm1019, %v1002, 0
        %v1045 = vsel %vm1019, %v1003, 0
        %v1048 = vsel %vm1019, %v1004, 0
        %v1051 = vsel %vm1019, %v1005, 0
        %v1054 = vsel %vm1019, %v1006, 0
        %1056 = vmatprep.subr.bf16.mxu0 0
        %1057 = vmatpush1.bf16.xpose.msra.mxu0 %v1033
        %1058 = vmatprep.subr.bf16.mxu0 0
        %1059 = vmatpush1.bf16.xpose.msra.mxu0 %v1036
        %1060 = vmatprep.subr.bf16.mxu0 0
        %1061 = vmatpush1.bf16.xpose.msra.mxu0 %v1039
        %1062 = vmatprep.subr.bf16.mxu0 0
        %1063 = vmatpush1.bf16.xpose.msra.mxu0 %v1042
        %1064 = vmatprep.subr.bf16.mxu0 0
        %1065 = vmatpush1.bf16.xpose.msra.mxu0 %v1045
        %1066 = vmatprep.subr.bf16.mxu0 0
        %1067 = vmatpush1.bf16.xpose.msra.mxu0 %v1048
        %1068 = vmatprep.subr.bf16.mxu0 0
        %1069 = vmatpush1.bf16.xpose.msra.mxu0 %v1051
        %1070 = vmatprep.subr.bf16.mxu0 0
        %1071 = vmatpush1.bf16.xpose.msra.mxu0 %v1054
        %1072 = vmatprep.subr.bf16.mxu0 0
        %1073 = vmatpush1.bf16.xpose.msra.mxu0 0
        %1074 = vmatprep.subr.bf16.mxu0 0
        %1075 = vmatpush1.bf16.xpose.msra.mxu0 0
        %1076 = vmatprep.subr.bf16.mxu0 0
        %1077 = vmatpush1.bf16.xpose.msra.mxu0 0
        %1078 = vmatprep.subr.bf16.mxu0 0
        %1079 = vmatpush1.bf16.xpose.msra.mxu0 0
        %1080 = vmatprep.subr.bf16.mxu0 0
        %1081 = vmatpush1.bf16.xpose.msra.mxu0 0
        %1082 = vmatprep.subr.bf16.mxu0 0
        %1083 = vmatpush1.bf16.xpose.msra.mxu0 0
        %1084 = vmatprep.subr.bf16.mxu0 0
        %1085 = vmatpush1.bf16.xpose.msra.mxu0 0
        %1086 = vmatprep.subr.bf16.mxu0 0
        %1087 = vmatpush1.bf16.xpose.msra.mxu0 0
        %1088 = vmatprep.mubr.bf16.mxu0 0
        %1089 = vmatmul.mubr.bf16.gmra.mrb[0].mxu0 %v1021
        %v1090 = vpop.f32.mrb[0].mxu0
        %v1091 = vadd.f32 0.0, %v1090
        %v1092 = vpop.f32.mrb[0].mxu0
        %v1093 = vpop.f32.mrb[0].mxu0
        %v1094 = vadd.f32 0.0, %v1093
        %v1095 = vpop.f32.mrb[0].mxu0
        %1096 = vmatprep.mubr.bf16.mxu0 0
        %1097 = vmatmul.mubr.bf16.gmra.mrb[0].mxu0 %v1024
        %v1098 = vpop.f32.mrb[0].mxu0
        %v1099 = vadd.f32 0.0, %v1098
        %v1100 = vpop.f32.mrb[0].mxu0
        %v1101 = vpop.f32.mrb[0].mxu0
        %v1102 = vadd.f32 0.0, %v1101
        %v1103 = vpop.f32.mrb[0].mxu0
        %1104 = vmatprep.mubr.bf16.mxu0 0
        %1105 = vmatmul.mubr.bf16.gmra.mrb[0].mxu0 %v1027
        %v1106 = vpop.f32.mrb[0].mxu0
        %v1107 = vadd.f32 0.0, %v1106
        %v1108 = vpop.f32.mrb[0].mxu0
        %v1109 = vpop.f32.mrb[0].mxu0
        %v1110 = vadd.f32 0.0, %v1109
        %v1111 = vpop.f32.mrb[0].mxu0
        %1112 = vmatprep.mubr.bf16.mxu0 0
        %1113 = vmatmul.mubr.bf16.gmra.mrb[0].mxu0 %v1030
        %v1114 = vpop.f32.mrb[0].mxu0
        %v1115 = vadd.f32 0.0, %v1114
        %v1116 = vpop.f32.mrb[0].mxu0
        %v1117 = vpop.f32.mrb[0].mxu0
        %v1118 = vadd.f32 0.0, %v1117
        %v1119 = vpop.f32.mrb[0].mxu0
        %1120 = vdwg.mxu0
        %v1121 = vld [vmem:[#allocation3] sm:$0xff]
        %v1122 = vld [vmem:[#allocation3 + $0x8] sm:$0xff]
        %v1123 = vld [vmem:[#allocation3 + $0x10] sm:$0xff]
        %v1124 = vld [vmem:[#allocation3 + $0x18] sm:$0xff]
        %v1125 = vld [vmem:[#allocation3 + $0x20] sm:$0xff]
        %v1126 = vld [vmem:[#allocation3 + $0x28] sm:$0xff]
        %v1127 = vld [vmem:[#allocation3 + $0x30] sm:$0xff]
        %v1128 = vld [vmem:[#allocation3 + $0x38] sm:$0xff]
        %1129 = vmax.xlane.f32.xlu0 %v1091
        %v1130 = vpop.xlane.xlu0 %1129
        %1131 = vmax.xlane.f32.xlu0 %v1094
        %v1132 = vpop.xlane.xlu0 %1131
        %1133 = vmax.xlane.f32.xlu0 %v1099
        %v1134 = vpop.xlane.xlu0 %1133
        %1135 = vmax.xlane.f32.xlu0 %v1102
        %v1136 = vpop.xlane.xlu0 %1135
        %1137 = vmax.xlane.f32.xlu0 %v1107
        %v1138 = vpop.xlane.xlu0 %1137
        %1139 = vmax.xlane.f32.xlu0 %v1110
        %v1140 = vpop.xlane.xlu0 %1139
        %1141 = vmax.xlane.f32.xlu0 %v1115
        %v1142 = vpop.xlane.xlu0 %1141
        %1143 = vmax.xlane.f32.xlu0 %v1118
        %v1144 = vpop.xlane.xlu0 %1143
        %v1145 = vmax.f32 %v1121, %v1130
        %v1146 = vmax.f32 %v1122, %v1132
        %v1147 = vmax.f32 %v1123, %v1134
        %v1148 = vmax.f32 %v1124, %v1136
        %v1149 = vmax.f32 %v1125, %v1138
        %v1150 = vmax.f32 %v1126, %v1140
        %v1151 = vmax.f32 %v1127, %v1142
        %v1152 = vmax.f32 %v1128, %v1144
        %v1153 = vsub.f32 %v1121, %v1145
        %v1154 = vsub.f32 %v1122, %v1146
        %v1155 = vsub.f32 %v1123, %v1147
        %v1156 = vsub.f32 %v1124, %v1148
        %v1157 = vsub.f32 %v1125, %v1149
        %v1158 = vsub.f32 %v1126, %v1150
        %v1159 = vsub.f32 %v1127, %v1151
        %v1160 = vsub.f32 %v1128, %v1152
        %v1161 = vmul.f32 %v1153, 1.442695
        %v1162 = vpow.pop %v1161
        %v1163 = vmul.f32 %v1154, 1.442695
        %v1164 = vpow.pop %v1163
        %v1165 = vmul.f32 %v1155, 1.442695
        %v1166 = vpow.pop %v1165
        %v1167 = vmul.f32 %v1156, 1.442695
        %v1168 = vpow.pop %v1167
        %v1169 = vmul.f32 %v1157, 1.442695
        %v1170 = vpow.pop %v1169
        %v1171 = vmul.f32 %v1158, 1.442695
        %v1172 = vpow.pop %v1171
        %v1173 = vmul.f32 %v1159, 1.442695
        %v1174 = vpow.pop %v1173
        %v1175 = vmul.f32 %v1160, 1.442695
        %v1176 = vpow.pop %v1175
        %1178 = vset.pattern.permute.xlu0 0
        %1179 = vperm.xlu0 %1178, %v1145
        %v1180 = vpop.permute.xlu0 %1179
        %1183 = vset.pattern.permute.xlu0 0
        %1184 = vperm.xlu0 %1183, %v1146
        %v1185 = vpop.permute.xlu0 %1184
        %1188 = vset.pattern.permute.xlu0 0
        %1189 = vperm.xlu0 %1188, %v1147
        %v1190 = vpop.permute.xlu0 %1189
        %1193 = vset.pattern.permute.xlu0 0
        %1194 = vperm.xlu0 %1193, %v1148
        %v1195 = vpop.permute.xlu0 %1194
        %1198 = vset.pattern.permute.xlu0 0
        %1199 = vperm.xlu0 %1198, %v1149
        %v1200 = vpop.permute.xlu0 %1199
        %1203 = vset.pattern.permute.xlu0 0
        %1204 = vperm.xlu0 %1203, %v1150
        %v1205 = vpop.permute.xlu0 %1204
        %1208 = vset.pattern.permute.xlu0 0
        %1209 = vperm.xlu0 %1208, %v1151
        %v1210 = vpop.permute.xlu0 %1209
        %1213 = vset.pattern.permute.xlu0 0
        %1214 = vperm.xlu0 %1213, %v1152
        %v1215 = vpop.permute.xlu0 %1214
        %v1217 = vsub.f32 %v1091, %v1180
        %v1218 = vsub.f32 %v1094, %v1185
        %v1219 = vsub.f32 %v1099, %v1190
        %v1220 = vsub.f32 %v1102, %v1195
        %v1221 = vsub.f32 %v1107, %v1200
        %v1222 = vsub.f32 %v1110, %v1205
        %v1223 = vsub.f32 %v1115, %v1210
        %v1224 = vsub.f32 %v1118, %v1215
        %v1225 = vmul.f32 %v1217, 1.442695
        %v1226 = vpow.pop %v1225
        %v1227 = vmul.f32 %v1218, 1.442695
        %v1228 = vpow.pop %v1227
        %v1229 = vmul.f32 %v1219, 1.442695
        %v1230 = vpow.pop %v1229
        %v1231 = vmul.f32 %v1220, 1.442695
        %v1232 = vpow.pop %v1231
        %v1233 = vmul.f32 %v1221, 1.442695
        %v1234 = vpow.pop %v1233
        %v1235 = vmul.f32 %v1222, 1.442695
        %v1236 = vpow.pop %v1235
        %v1237 = vmul.f32 %v1223, 1.442695
        %v1238 = vpow.pop %v1237
        %v1239 = vmul.f32 %v1224, 1.442695
        %v1240 = vpow.pop %v1239
        %v1241 = vld [vmem:[#allocation4] sm:$0xff]
        %v1242 = vld [vmem:[#allocation4 + $0x8] sm:$0xff]
        %v1243 = vld [vmem:[#allocation4 + $0x10] sm:$0xff]
        %v1244 = vld [vmem:[#allocation4 + $0x18] sm:$0xff]
        %v1245 = vld [vmem:[#allocation4 + $0x20] sm:$0xff]
        %v1246 = vld [vmem:[#allocation4 + $0x28] sm:$0xff]
        %v1247 = vld [vmem:[#allocation4 + $0x30] sm:$0xff]
        %v1248 = vld [vmem:[#allocation4 + $0x38] sm:$0xff]
        %v1249 = vmul.f32 %v1162, %v1241
        %v1250 = vmul.f32 %v1164, %v1242
        %v1251 = vmul.f32 %v1166, %v1243
        %v1252 = vmul.f32 %v1168, %v1244
        %v1253 = vmul.f32 %v1170, %v1245
        %v1254 = vmul.f32 %v1172, %v1246
        %v1255 = vmul.f32 %v1174, %v1247
        %v1256 = vmul.f32 %v1176, %v1248
        %1257 = vadd.xlane.f32.xlu0 %v1226
        %v1258 = vpop.xlane.xlu0 %1257
        %1259 = vadd.xlane.f32.xlu0 %v1228
        %v1260 = vpop.xlane.xlu0 %1259
        %1261 = vadd.xlane.f32.xlu0 %v1230
        %v1262 = vpop.xlane.xlu0 %1261
        %1263 = vadd.xlane.f32.xlu0 %v1232
        %v1264 = vpop.xlane.xlu0 %1263
        %1265 = vadd.xlane.f32.xlu0 %v1234
        %v1266 = vpop.xlane.xlu0 %1265
        %1267 = vadd.xlane.f32.xlu0 %v1236
        %v1268 = vpop.xlane.xlu0 %1267
        %1269 = vadd.xlane.f32.xlu0 %v1238
        %v1270 = vpop.xlane.xlu0 %1269
        %1271 = vadd.xlane.f32.xlu0 %v1240
        %v1272 = vpop.xlane.xlu0 %1271
        %v1273 = vadd.f32 %v1249, %v1258
        %v1274 = vadd.f32 %v1250, %v1260
        %v1275 = vadd.f32 %v1251, %v1262
        %v1276 = vadd.f32 %v1252, %v1264
        %v1277 = vadd.f32 %v1253, %v1266
        %v1278 = vadd.f32 %v1254, %v1268
        %v1279 = vadd.f32 %v1255, %v1270
        %v1280 = vadd.f32 %v1256, %v1272
        %vm1281 = vcmask 7168
        %1282 = vst.msk [vmem:[#allocation4] sm:$0xff] %vm1281, %v1273
        %1283 = vst.msk [vmem:[#allocation4 + $0x8] sm:$0xff] %vm1281, %v1274
        %1284 = vst.msk [vmem:[#allocation4 + $0x10] sm:$0xff] %vm1281, %v1275
        %1285 = vst.msk [vmem:[#allocation4 + $0x18] sm:$0xff] %vm1281, %v1276
        %1286 = vst.msk [vmem:[#allocation4 + $0x20] sm:$0xff] %vm1281, %v1277
        %1287 = vst.msk [vmem:[#allocation4 + $0x28] sm:$0xff] %vm1281, %v1278
        %1288 = vst.msk [vmem:[#allocation4 + $0x30] sm:$0xff] %vm1281, %v1279
        %1289 = vst.msk [vmem:[#allocation4 + $0x38] sm:$0xff] %vm1281, %v1280
        %1290 = vst.msk [vmem:[#allocation3] sm:$0xff] %vm1281, %v1145
        %1291 = vst.msk [vmem:[#allocation3 + $0x8] sm:$0xff] %vm1281, %v1146
        %1292 = vst.msk [vmem:[#allocation3 + $0x10] sm:$0xff] %vm1281, %v1147
        %1293 = vst.msk [vmem:[#allocation3 + $0x18] sm:$0xff] %vm1281, %v1148
        %1294 = vst.msk [vmem:[#allocation3 + $0x20] sm:$0xff] %vm1281, %v1149
        %1295 = vst.msk [vmem:[#allocation3 + $0x28] sm:$0xff] %vm1281, %v1150
        %1296 = vst.msk [vmem:[#allocation3 + $0x30] sm:$0xff] %vm1281, %v1151
        %1297 = vst.msk [vmem:[#allocation3 + $0x38] sm:$0xff] %vm1281, %v1152
        %v1298 = vpack.c.bf16 %v1228, %v1226
        %v1299 = vpack.c.bf16 %v1232, %v1230
        %v1300 = vpack.c.bf16 %v1236, %v1234
        %v1301 = vpack.c.bf16 %v1240, %v1238
        %1302 = vmatprep.subr.bf16.mxu0 0
        %1303 = vmatpush1.bf16.msra.mxu0 %v1007
        %1304 = vmatprep.subr.bf16.mxu0 0
        %1305 = vmatpush1.bf16.msra.mxu0 %v1008
        %1306 = vmatprep.subr.bf16.mxu0 0
        %1307 = vmatpush1.bf16.msra.mxu0 %v1009
        %1308 = vmatprep.subr.bf16.mxu0 0
        %1309 = vmatpush1.bf16.msra.mxu0 %v1010
        %1310 = vmatprep.subr.bf16.mxu0 0
        %1311 = vmatpush1.bf16.msra.mxu0 %v1011
        %1312 = vmatprep.subr.bf16.mxu0 0
        %1313 = vmatpush1.bf16.msra.mxu0 %v1012
        %1314 = vmatprep.subr.bf16.mxu0 0
        %1315 = vmatpush1.bf16.msra.mxu0 %v1013
        %1316 = vmatprep.subr.bf16.mxu0 0
        %1317 = vmatpush1.bf16.msra.mxu0 %v1014
        %1318 = vmatprep.subr.bf16.mxu0 0
        %1319 = vmatpush1.bf16.msra.mxu0 0
        %1320 = vmatprep.subr.bf16.mxu0 0
        %1321 = vmatpush1.bf16.msra.mxu0 0
        %1322 = vmatprep.subr.bf16.mxu0 0
        %1323 = vmatpush1.bf16.msra.mxu0 0
        %1324 = vmatprep.subr.bf16.mxu0 0
        %1325 = vmatpush1.bf16.msra.mxu0 0
        %1326 = vmatprep.subr.bf16.mxu0 0
        %1327 = vmatpush1.bf16.msra.mxu0 0
        %1328 = vmatprep.subr.bf16.mxu0 0
        %1329 = vmatpush1.bf16.msra.mxu0 0
        %1330 = vmatprep.subr.bf16.mxu0 0
        %1331 = vmatpush1.bf16.msra.mxu0 0
        %1332 = vmatprep.subr.bf16.mxu0 0
        %1333 = vmatpush1.bf16.msra.mxu0 0
        %1334 = vmatprep.mubr.bf16.mxu0 0
        %1335 = vmatmul.mubr.bf16.gmra.mrb[0].mxu0 %v1298
        %v1336 = vpop.f32.mrb[0].mxu0
        %v1337 = vadd.f32 0.0, %v1336
        %v1338 = vpop.f32.mrb[0].mxu0
        %v1339 = vpop.f32.mrb[0].mxu0
        %v1340 = vadd.f32 0.0, %v1339
        %v1341 = vpop.f32.mrb[0].mxu0
        %1342 = vmatprep.mubr.bf16.mxu0 0
        %1343 = vmatmul.mubr.bf16.gmra.mrb[0].mxu0 %v1299
        %v1344 = vpop.f32.mrb[0].mxu0
        %v1345 = vadd.f32 0.0, %v1344
        %v1346 = vpop.f32.mrb[0].mxu0
        %v1347 = vpop.f32.mrb[0].mxu0
        %v1348 = vadd.f32 0.0, %v1347
        %v1349 = vpop.f32.mrb[0].mxu0
        %1350 = vmatprep.mubr.bf16.mxu0 0
        %1351 = vmatmul.mubr.bf16.gmra.mrb[0].mxu0 %v1300
        %v1352 = vpop.f32.mrb[0].mxu0
        %v1353 = vadd.f32 0.0, %v1352
        %v1354 = vpop.f32.mrb[0].mxu0
        %v1355 = vpop.f32.mrb[0].mxu0
        %v1356 = vadd.f32 0.0, %v1355
        %v1357 = vpop.f32.mrb[0].mxu0
        %1358 = vmatprep.mubr.bf16.mxu0 0
        %1359 = vmatmul.mubr.bf16.gmra.mrb[0].mxu0 %v1301
        %v1360 = vpop.f32.mrb[0].mxu0
        %v1361 = vadd.f32 0.0, %v1360
        %v1362 = vpop.f32.mrb[0].mxu0
        %v1363 = vpop.f32.mrb[0].mxu0
        %v1364 = vadd.f32 0.0, %v1363
        %v1365 = vpop.f32.mrb[0].mxu0
        %1366 = vdwg.mxu0
        %v1367 = vld [vmem:[#allocation5] sm:$0xff]
        %v1368 = vld [vmem:[#allocation5 + $0x8] sm:$0xff]
        %v1369 = vld [vmem:[#allocation5 + $0x10] sm:$0xff]
        %v1370 = vld [vmem:[#allocation5 + $0x18] sm:$0xff]
        %v1371 = vld [vmem:[#allocation5 + $0x20] sm:$0xff]
        %v1372 = vld [vmem:[#allocation5 + $0x28] sm:$0xff]
        %v1373 = vld [vmem:[#allocation5 + $0x30] sm:$0xff]
        %v1374 = vld [vmem:[#allocation5 + $0x38] sm:$0xff]
        %1376 = vset.pattern.permute.xlu0 0
        %1377 = vperm.xlu0 %1376, %v1162
        %v1378 = vpop.permute.xlu0 %1377
        %1381 = vset.pattern.permute.xlu0 0
        %1382 = vperm.xlu0 %1381, %v1164
        %v1383 = vpop.permute.xlu0 %1382
        %1386 = vset.pattern.permute.xlu0 0
        %1387 = vperm.xlu0 %1386, %v1166
        %v1388 = vpop.permute.xlu0 %1387
        %1391 = vset.pattern.permute.xlu0 0
        %1392 = vperm.xlu0 %1391, %v1168
        %v1393 = vpop.permute.xlu0 %1392
        %1396 = vset.pattern.permute.xlu0 0
        %1397 = vperm.xlu0 %1396, %v1170
        %v1398 = vpop.permute.xlu0 %1397
        %1401 = vset.pattern.permute.xlu0 0
        %1402 = vperm.xlu0 %1401, %v1172
        %v1403 = vpop.permute.xlu0 %1402
        %1406 = vset.pattern.permute.xlu0 0
        %1407 = vperm.xlu0 %1406, %v1174
        %v1408 = vpop.permute.xlu0 %1407
        %1411 = vset.pattern.permute.xlu0 0
        %1412 = vperm.xlu0 %1411, %v1176
        %v1413 = vpop.permute.xlu0 %1412
        %v1415 = vmul.f32 %v1378, %v1367
        %v1416 = vmul.f32 %v1383, %v1368
        %v1417 = vmul.f32 %v1388, %v1369
        %v1418 = vmul.f32 %v1393, %v1370
        %v1419 = vmul.f32 %v1398, %v1371
        %v1420 = vmul.f32 %v1403, %v1372
        %v1421 = vmul.f32 %v1408, %v1373
        %v1422 = vmul.f32 %v1413, %v1374
        %v1423 = vadd.f32 %v1415, %v1337
        %v1424 = vadd.f32 %v1416, %v1340
        %v1425 = vadd.f32 %v1417, %v1345
        %v1426 = vadd.f32 %v1418, %v1348
        %v1427 = vadd.f32 %v1419, %v1353
        %v1428 = vadd.f32 %v1420, %v1356
        %v1429 = vadd.f32 %v1421, %v1361
        %v1430 = vadd.f32 %v1422, %v1364
        %1431 = vst.msk [vmem:[#allocation5] sm:$0xff] %vm1019, %v1423
        %1432 = vst.msk [vmem:[#allocation5 + $0x8] sm:$0xff] %vm1019, %v1424
        %1433 = vst.msk [vmem:[#allocation5 + $0x10] sm:$0xff] %vm1019, %v1425
        %1434 = vst.msk [vmem:[#allocation5 + $0x18] sm:$0xff] %vm1019, %v1426
        %1435 = vst.msk [vmem:[#allocation5 + $0x20] sm:$0xff] %vm1019, %v1427
        %1436 = vst.msk [vmem:[#allocation5 + $0x28] sm:$0xff] %vm1019, %v1428
        %1437 = vst.msk [vmem:[#allocation5 + $0x30] sm:$0xff] %vm1019, %v1429
        %1438 = vst.msk [vmem:[#allocation5 + $0x38] sm:$0xff] %vm1019, %v1430
        %1443 = vrot.lane.b32.xlu0 %v1015, 112
        %v1444 = vpop.permute.xlu0 %1443
        %1445 = vrot.lane.b32.xlu0 %v1016, 112
        %v1446 = vpop.permute.xlu0 %1445
        %1447 = vrot.lane.b32.xlu0 %v1017, 112
        %v1448 = vpop.permute.xlu0 %1447
        %1449 = vrot.lane.b32.xlu0 %v1018, 112
        %v1450 = vpop.permute.xlu0 %1449
        %1459 = vrot.lane.b32.xlu0 %v999, 112
        %v1460 = vpop.permute.xlu0 %1459
        %1461 = vrot.lane.b32.xlu0 %v1000, 112
        %v1462 = vpop.permute.xlu0 %1461
        %1463 = vrot.lane.b32.xlu0 %v1001, 112
        %v1464 = vpop.permute.xlu0 %1463
        %1465 = vrot.lane.b32.xlu0 %v1002, 112
        %v1466 = vpop.permute.xlu0 %1465
        %1467 = vrot.lane.b32.xlu0 %v1003, 112
        %v1468 = vpop.permute.xlu0 %1467
        %1469 = vrot.lane.b32.xlu0 %v1004, 112
        %v1470 = vpop.permute.xlu0 %1469
        %1471 = vrot.lane.b32.xlu0 %v1005, 112
        %v1472 = vpop.permute.xlu0 %1471
        %1473 = vrot.lane.b32.xlu0 %v1006, 112
        %v1474 = vpop.permute.xlu0 %1473
        %v1476 = vsel %vm1019, %v1444, 0
        %v1479 = vsel %vm1019, %v1446, 0
        %v1482 = vsel %vm1019, %v1448, 0
        %v1485 = vsel %vm1019, %v1450, 0
        %v1488 = vsel %vm1019, %v1460, 0
        %v1491 = vsel %vm1019, %v1462, 0
        %v1494 = vsel %vm1019, %v1464, 0
        %v1497 = vsel %vm1019, %v1466, 0
        %v1500 = vsel %vm1019, %v1468, 0
        %v1503 = vsel %vm1019, %v1470, 0
        %v1506 = vsel %vm1019, %v1472, 0
        %v1509 = vsel %vm1019, %v1474, 0
        %1511 = vmatprep.subr.bf16.mxu0 0
        %1512 = vmatpush1.bf16.xpose.msra.mxu0 %v1488
        %1513 = vmatprep.subr.bf16.mxu0 0
        %1514 = vmatpush1.bf16.xpose.msra.mxu0 %v1491
        %1515 = vmatprep.subr.bf16.mxu0 0
        %1516 = vmatpush1.bf16.xpose.msra.mxu0 %v1494
        %1517 = vmatprep.subr.bf16.mxu0 0
        %1518 = vmatpush1.bf16.xpose.msra.mxu0 %v1497
        %1519 = vmatprep.subr.bf16.mxu0 0
        %1520 = vmatpush1.bf16.xpose.msra.mxu0 %v1500
        %1521 = vmatprep.subr.bf16.mxu0 0
        %1522 = vmatpush1.bf16.xpose.msra.mxu0 %v1503
        %1523 = vmatprep.subr.bf16.mxu0 0
        %1524 = vmatpush1.bf16.xpose.msra.mxu0 %v1506
        %1525 = vmatprep.subr.bf16.mxu0 0
        %1526 = vmatpush1.bf16.xpose.msra.mxu0 %v1509
        %1527 = vmatprep.subr.bf16.mxu0 0
        %1528 = vmatpush1.bf16.xpose.msra.mxu0 0
        %1529 = vmatprep.subr.bf16.mxu0 0
        %1530 = vmatpush1.bf16.xpose.msra.mxu0 0
        %1531 = vmatprep.subr.bf16.mxu0 0
        %1532 = vmatpush1.bf16.xpose.msra.mxu0 0
        %1533 = vmatprep.subr.bf16.mxu0 0
        %1534 = vmatpush1.bf16.xpose.msra.mxu0 0
        %1535 = vmatprep.subr.bf16.mxu0 0
        %1536 = vmatpush1.bf16.xpose.msra.mxu0 0
        %1537 = vmatprep.subr.bf16.mxu0 0
        %1538 = vmatpush1.bf16.xpose.msra.mxu0 0
        %1539 = vmatprep.subr.bf16.mxu0 0
        %1540 = vmatpush1.bf16.xpose.msra.mxu0 0
        %1541 = vmatprep.subr.bf16.mxu0 0
        %1542 = vmatpush1.bf16.xpose.msra.mxu0 0
        %1543 = vmatprep.mubr.bf16.mxu0 0
        %1544 = vmatmul.mubr.bf16.gmra.mrb[0].mxu0 %v1476
        %v1545 = vpop.f32.mrb[0].mxu0
        %v1546 = vadd.f32 0.0, %v1545
        %v1547 = vpop.f32.mrb[0].mxu0
        %v1548 = vpop.f32.mrb[0].mxu0
        %v1549 = vadd.f32 0.0, %v1548
        %v1550 = vpop.f32.mrb[0].mxu0
        %1551 = vmatprep.mubr.bf16.mxu0 0
        %1552 = vmatmul.mubr.bf16.gmra.mrb[0].mxu0 %v1479
        %v1553 = vpop.f32.mrb[0].mxu0
        %v1554 = vadd.f32 0.0, %v1553
        %v1555 = vpop.f32.mrb[0].mxu0
        %v1556 = vpop.f32.mrb[0].mxu0
        %v1557 = vadd.f32 0.0, %v1556
        %v1558 = vpop.f32.mrb[0].mxu0
        %1559 = vmatprep.mubr.bf16.mxu0 0
        %1560 = vmatmul.mubr.bf16.gmra.mrb[0].mxu0 %v1482
        %v1561 = vpop.f32.mrb[0].mxu0
        %v1562 = vadd.f32 0.0, %v1561
        %v1563 = vpop.f32.mrb[0].mxu0
        %v1564 = vpop.f32.mrb[0].mxu0
        %v1565 = vadd.f32 0.0, %v1564
        %v1566 = vpop.f32.mrb[0].mxu0
        %1567 = vmatprep.mubr.bf16.mxu0 0
        %1568 = vmatmul.mubr.bf16.gmra.mrb[0].mxu0 %v1485
        %v1569 = vpop.f32.mrb[0].mxu0
        %v1570 = vadd.f32 0.0, %v1569
        %v1571 = vpop.f32.mrb[0].mxu0
        %v1572 = vpop.f32.mrb[0].mxu0
        %v1573 = vadd.f32 0.0, %v1572
        %v1574 = vpop.f32.mrb[0].mxu0
        %1575 = vdwg.mxu0
        %s1576 = scalar_lea.vmem [#allocation3], 64
        %v1577 = vld [vmem:[%s1576] sm:$0xff]
        %v1578 = vld [vmem:[%s1576 + $0x8] sm:$0xff]
        %v1579 = vld [vmem:[%s1576 + $0x10] sm:$0xff]
        %v1580 = vld [vmem:[%s1576 + $0x18] sm:$0xff]
        %v1581 = vld [vmem:[%s1576 + $0x20] sm:$0xff]
        %v1582 = vld [vmem:[%s1576 + $0x28] sm:$0xff]
        %v1583 = vld [vmem:[%s1576 + $0x30] sm:$0xff]
        %v1584 = vld [vmem:[%s1576 + $0x38] sm:$0xff]
        %1585 = vmax.xlane.f32.xlu0 %v1546
        %v1586 = vpop.xlane.xlu0 %1585
        %1587 = vmax.xlane.f32.xlu0 %v1549
        %v1588 = vpop.xlane.xlu0 %1587
        %1589 = vmax.xlane.f32.xlu0 %v1554
        %v1590 = vpop.xlane.xlu0 %1589
        %1591 = vmax.xlane.f32.xlu0 %v1557
        %v1592 = vpop.xlane.xlu0 %1591
        %1593 = vmax.xlane.f32.xlu0 %v1562
        %v1594 = vpop.xlane.xlu0 %1593
        %1595 = vmax.xlane.f32.xlu0 %v1565
        %v1596 = vpop.xlane.xlu0 %1595
        %1597 = vmax.xlane.f32.xlu0 %v1570
        %v1598 = vpop.xlane.xlu0 %1597
        %1599 = vmax.xlane.f32.xlu0 %v1573
        %v1600 = vpop.xlane.xlu0 %1599
        %v1601 = vmax.f32 %v1577, %v1586
        %v1602 = vmax.f32 %v1578, %v1588
        %v1603 = vmax.f32 %v1579, %v1590
        %v1604 = vmax.f32 %v1580, %v1592
        %v1605 = vmax.f32 %v1581, %v1594
        %v1606 = vmax.f32 %v1582, %v1596
        %v1607 = vmax.f32 %v1583, %v1598
        %v1608 = vmax.f32 %v1584, %v1600
        %v1609 = vsub.f32 %v1577, %v1601
        %v1610 = vsub.f32 %v1578, %v1602
        %v1611 = vsub.f32 %v1579, %v1603
        %v1612 = vsub.f32 %v1580, %v1604
        %v1613 = vsub.f32 %v1581, %v1605
        %v1614 = vsub.f32 %v1582, %v1606
        %v1615 = vsub.f32 %v1583, %v1607
        %v1616 = vsub.f32 %v1584, %v1608
        %v1617 = vmul.f32 %v1609, 1.442695
        %v1618 = vpow.pop %v1617
        %v1619 = vmul.f32 %v1610, 1.442695
        %v1620 = vpow.pop %v1619
        %v1621 = vmul.f32 %v1611, 1.442695
        %v1622 = vpow.pop %v1621
        %v1623 = vmul.f32 %v1612, 1.442695
        %v1624 = vpow.pop %v1623
        %v1625 = vmul.f32 %v1613, 1.442695
        %v1626 = vpow.pop %v1625
        %v1627 = vmul.f32 %v1614, 1.442695
        %v1628 = vpow.pop %v1627
        %v1629 = vmul.f32 %v1615, 1.442695
        %v1630 = vpow.pop %v1629
        %v1631 = vmul.f32 %v1616, 1.442695
        %v1632 = vpow.pop %v1631
        %1634 = vset.pattern.permute.xlu0 0
        %1635 = vperm.xlu0 %1634, %v1601
        %v1636 = vpop.permute.xlu0 %1635
        %1639 = vset.pattern.permute.xlu0 0
        %1640 = vperm.xlu0 %1639, %v1602
        %v1641 = vpop.permute.xlu0 %1640
        %1644 = vset.pattern.permute.xlu0 0
        %1645 = vperm.xlu0 %1644, %v1603
        %v1646 = vpop.permute.xlu0 %1645
        %1649 = vset.pattern.permute.xlu0 0
        %1650 = vperm.xlu0 %1649, %v1604
        %v1651 = vpop.permute.xlu0 %1650
        %1654 = vset.pattern.permute.xlu0 0
        %1655 = vperm.xlu0 %1654, %v1605
        %v1656 = vpop.permute.xlu0 %1655
        %1659 = vset.pattern.permute.xlu0 0
        %1660 = vperm.xlu0 %1659, %v1606
        %v1661 = vpop.permute.xlu0 %1660
        %1664 = vset.pattern.permute.xlu0 0
        %1665 = vperm.xlu0 %1664, %v1607
        %v1666 = vpop.permute.xlu0 %1665
        %1669 = vset.pattern.permute.xlu0 0
        %1670 = vperm.xlu0 %1669, %v1608
        %v1671 = vpop.permute.xlu0 %1670
        %v1673 = vsub.f32 %v1546, %v1636
        %v1674 = vsub.f32 %v1549, %v1641
        %v1675 = vsub.f32 %v1554, %v1646
        %v1676 = vsub.f32 %v1557, %v1651
        %v1677 = vsub.f32 %v1562, %v1656
        %v1678 = vsub.f32 %v1565, %v1661
        %v1679 = vsub.f32 %v1570, %v1666
        %v1680 = vsub.f32 %v1573, %v1671
        %v1681 = vmul.f32 %v1673, 1.442695
        %v1682 = vpow.pop %v1681
        %v1683 = vmul.f32 %v1674, 1.442695
        %v1684 = vpow.pop %v1683
        %v1685 = vmul.f32 %v1675, 1.442695
        %v1686 = vpow.pop %v1685
        %v1687 = vmul.f32 %v1676, 1.442695
        %v1688 = vpow.pop %v1687
        %v1689 = vmul.f32 %v1677, 1.442695
        %v1690 = vpow.pop %v1689
        %v1691 = vmul.f32 %v1678, 1.442695
        %v1692 = vpow.pop %v1691
        %v1693 = vmul.f32 %v1679, 1.442695
        %v1694 = vpow.pop %v1693
        %v1695 = vmul.f32 %v1680, 1.442695
        %v1696 = vpow.pop %v1695
        %s1697 = scalar_lea.vmem [#allocation4], 64
        %v1698 = vld [vmem:[%s1697] sm:$0xff]
        %v1699 = vld [vmem:[%s1697 + $0x8] sm:$0xff]
        %v1700 = vld [vmem:[%s1697 + $0x10] sm:$0xff]
        %v1701 = vld [vmem:[%s1697 + $0x18] sm:$0xff]
        %v1702 = vld [vmem:[%s1697 + $0x20] sm:$0xff]
        %v1703 = vld [vmem:[%s1697 + $0x28] sm:$0xff]
        %v1704 = vld [vmem:[%s1697 + $0x30] sm:$0xff]
        %v1705 = vld [vmem:[%s1697 + $0x38] sm:$0xff]
        %v1706 = vmul.f32 %v1618, %v1698
        %v1707 = vmul.f32 %v1620, %v1699
        %v1708 = vmul.f32 %v1622, %v1700
        %v1709 = vmul.f32 %v1624, %v1701
        %v1710 = vmul.f32 %v1626, %v1702
        %v1711 = vmul.f32 %v1628, %v1703
        %v1712 = vmul.f32 %v1630, %v1704
        %v1713 = vmul.f32 %v1632, %v1705
        %1714 = vadd.xlane.f32.xlu0 %v1682
        %v1715 = vpop.xlane.xlu0 %1714
        %1716 = vadd.xlane.f32.xlu0 %v1684
        %v1717 = vpop.xlane.xlu0 %1716
        %1718 = vadd.xlane.f32.xlu0 %v1686
        %v1719 = vpop.xlane.xlu0 %1718
        %1720 = vadd.xlane.f32.xlu0 %v1688
        %v1721 = vpop.xlane.xlu0 %1720
        %1722 = vadd.xlane.f32.xlu0 %v1690
        %v1723 = vpop.xlane.xlu0 %1722
        %1724 = vadd.xlane.f32.xlu0 %v1692
        %v1725 = vpop.xlane.xlu0 %1724
        %1726 = vadd.xlane.f32.xlu0 %v1694
        %v1727 = vpop.xlane.xlu0 %1726
        %1728 = vadd.xlane.f32.xlu0 %v1696
        %v1729 = vpop.xlane.xlu0 %1728
        %v1730 = vadd.f32 %v1706, %v1715
        %v1731 = vadd.f32 %v1707, %v1717
        %v1732 = vadd.f32 %v1708, %v1719
        %v1733 = vadd.f32 %v1709, %v1721
        %v1734 = vadd.f32 %v1710, %v1723
        %v1735 = vadd.f32 %v1711, %v1725
        %v1736 = vadd.f32 %v1712, %v1727
        %v1737 = vadd.f32 %v1713, %v1729
        %1738 = vst.msk [vmem:[%s1697] sm:$0xff] %vm1281, %v1730
        %1739 = vst.msk [vmem:[%s1697 + $0x8] sm:$0xff] %vm1281, %v1731
        %1740 = vst.msk [vmem:[%s1697 + $0x10] sm:$0xff] %vm1281, %v1732
        %1741 = vst.msk [vmem:[%s1697 + $0x18] sm:$0xff] %vm1281, %v1733
        %1742 = vst.msk [vmem:[%s1697 + $0x20] sm:$0xff] %vm1281, %v1734
        %1743 = vst.msk [vmem:[%s1697 + $0x28] sm:$0xff] %vm1281, %v1735
        %1744 = vst.msk [vmem:[%s1697 + $0x30] sm:$0xff] %vm1281, %v1736
        %1745 = vst.msk [vmem:[%s1697 + $0x38] sm:$0xff] %vm1281, %v1737
        %1746 = vst.msk [vmem:[%s1576] sm:$0xff] %vm1281, %v1601
        %1747 = vst.msk [vmem:[%s1576 + $0x8] sm:$0xff] %vm1281, %v1602
        %1748 = vst.msk [vmem:[%s1576 + $0x10] sm:$0xff] %vm1281, %v1603
        %1749 = vst.msk [vmem:[%s1576 + $0x18] sm:$0xff] %vm1281, %v1604
        %1750 = vst.msk [vmem:[%s1576 + $0x20] sm:$0xff] %vm1281, %v1605
        %1751 = vst.msk [vmem:[%s1576 + $0x28] sm:$0xff] %vm1281, %v1606
        %1752 = vst.msk [vmem:[%s1576 + $0x30] sm:$0xff] %vm1281, %v1607
        %1753 = vst.msk [vmem:[%s1576 + $0x38] sm:$0xff] %vm1281, %v1608
        %v1754 = vpack.c.bf16 %v1684, %v1682
        %v1755 = vpack.c.bf16 %v1688, %v1686
        %v1756 = vpack.c.bf16 %v1692, %v1690
        %v1757 = vpack.c.bf16 %v1696, %v1694
        %1766 = vrot.lane.b32.xlu0 %v1007, 112
        %v1767 = vpop.permute.xlu0 %1766
        %1768 = vrot.lane.b32.xlu0 %v1008, 112
        %v1769 = vpop.permute.xlu0 %1768
        %1770 = vrot.lane.b32.xlu0 %v1009, 112
        %v1771 = vpop.permute.xlu0 %1770
        %1772 = vrot.lane.b32.xlu0 %v1010, 112
        %v1773 = vpop.permute.xlu0 %1772
        %1774 = vrot.lane.b32.xlu0 %v1011, 112
        %v1775 = vpop.permute.xlu0 %1774
        %1776 = vrot.lane.b32.xlu0 %v1012, 112
        %v1777 = vpop.permute.xlu0 %1776
        %1778 = vrot.lane.b32.xlu0 %v1013, 112
        %v1779 = vpop.permute.xlu0 %1778
        %1780 = vrot.lane.b32.xlu0 %v1014, 112
        %v1781 = vpop.permute.xlu0 %1780
        %1790 = vmatprep.subr.bf16.mxu0 0
        %1791 = vmatpush1.bf16.msra.mxu0 %v1767
        %1792 = vmatprep.subr.bf16.mxu0 0
        %1793 = vmatpush1.bf16.msra.mxu0 %v1769
        %1794 = vmatprep.subr.bf16.mxu0 0
        %1795 = vmatpush1.bf16.msra.mxu0 %v1771
        %1796 = vmatprep.subr.bf16.mxu0 0
        %1797 = vmatpush1.bf16.msra.mxu0 %v1773
        %1798 = vmatprep.subr.bf16.mxu0 0
        %1799 = vmatpush1.bf16.msra.mxu0 %v1775
        %1800 = vmatprep.subr.bf16.mxu0 0
        %1801 = vmatpush1.bf16.msra.mxu0 %v1777
        %1802 = vmatprep.subr.bf16.mxu0 0
        %1803 = vmatpush1.bf16.msra.mxu0 %v1779
        %1804 = vmatprep.subr.bf16.mxu0 0
        %1805 = vmatpush1.bf16.msra.mxu0 %v1781
        %1806 = vmatprep.subr.bf16.mxu0 0
        %1807 = vmatpush1.bf16.msra.mxu0 0
        %1808 = vmatprep.subr.bf16.mxu0 0
        %1809 = vmatpush1.bf16.msra.mxu0 0
        %1810 = vmatprep.subr.bf16.mxu0 0
        %1811 = vmatpush1.bf16.msra.mxu0 0
        %1812 = vmatprep.subr.bf16.mxu0 0
        %1813 = vmatpush1.bf16.msra.mxu0 0
        %1814 = vmatprep.subr.bf16.mxu0 0
        %1815 = vmatpush1.bf16.msra.mxu0 0
        %1816 = vmatprep.subr.bf16.mxu0 0
        %1817 = vmatpush1.bf16.msra.mxu0 0
        %1818 = vmatprep.subr.bf16.mxu0 0
        %1819 = vmatpush1.bf16.msra.mxu0 0
        %1820 = vmatprep.subr.bf16.mxu0 0
        %1821 = vmatpush1.bf16.msra.mxu0 0
        %1822 = vmatprep.mubr.bf16.mxu0 0
        %1823 = vmatmul.mubr.bf16.gmra.mrb[0].mxu0 %v1754
        %v1824 = vpop.f32.mrb[0].mxu0
        %v1825 = vadd.f32 0.0, %v1824
        %v1826 = vpop.f32.mrb[0].mxu0
        %v1827 = vpop.f32.mrb[0].mxu0
        %v1828 = vadd.f32 0.0, %v1827
        %v1829 = vpop.f32.mrb[0].mxu0
        %1830 = vmatprep.mubr.bf16.mxu0 0
        %1831 = vmatmul.mubr.bf16.gmra.mrb[0].mxu0 %v1755
        %v1832 = vpop.f32.mrb[0].mxu0
        %v1833 = vadd.f32 0.0, %v1832
        %v1834 = vpop.f32.mrb[0].mxu0
        %v1835 = vpop.f32.mrb[0].mxu0
        %v1836 = vadd.f32 0.0, %v1835
        %v1837 = vpop.f32.mrb[0].mxu0
        %1838 = vmatprep.mubr.bf16.mxu0 0
        %1839 = vmatmul.mubr.bf16.gmra.mrb[0].mxu0 %v1756
        %v1840 = vpop.f32.mrb[0].mxu0
        %v1841 = vadd.f32 0.0, %v1840
        %v1842 = vpop.f32.mrb[0].mxu0
        %v1843 = vpop.f32.mrb[0].mxu0
        %v1844 = vadd.f32 0.0, %v1843
        %v1845 = vpop.f32.mrb[0].mxu0
        %1846 = vmatprep.mubr.bf16.mxu0 0
        %1847 = vmatmul.mubr.bf16.gmra.mrb[0].mxu0 %v1757
        %v1848 = vpop.f32.mrb[0].mxu0
        %v1849 = vadd.f32 0.0, %v1848
        %v1850 = vpop.f32.mrb[0].mxu0
        %v1851 = vpop.f32.mrb[0].mxu0
        %v1852 = vadd.f32 0.0, %v1851
        %v1853 = vpop.f32.mrb[0].mxu0
        %1854 = vdwg.mxu0
        %v1855 = vld [vmem:[#allocation5] sm:$0xff]
        %v1856 = vld [vmem:[#allocation5 + $0x8] sm:$0xff]
        %v1857 = vld [vmem:[#allocation5 + $0x10] sm:$0xff]
        %v1858 = vld [vmem:[#allocation5 + $0x18] sm:$0xff]
        %v1859 = vld [vmem:[#allocation5 + $0x20] sm:$0xff]
        %v1860 = vld [vmem:[#allocation5 + $0x28] sm:$0xff]
        %v1861 = vld [vmem:[#allocation5 + $0x30] sm:$0xff]
        %v1862 = vld [vmem:[#allocation5 + $0x38] sm:$0xff]
        %1864 = vset.pattern.permute.xlu0 0
        %1865 = vperm.xlu0 %1864, %v1618
        %v1866 = vpop.permute.xlu0 %1865
        %1869 = vset.pattern.permute.xlu0 0
        %1870 = vperm.xlu0 %1869, %v1620
        %v1871 = vpop.permute.xlu0 %1870
        %1874 = vset.pattern.permute.xlu0 0
        %1875 = vperm.xlu0 %1874, %v1622
        %v1876 = vpop.permute.xlu0 %1875
        %1879 = vset.pattern.permute.xlu0 0
        %1880 = vperm.xlu0 %1879, %v1624
        %v1881 = vpop.permute.xlu0 %1880
        %1884 = vset.pattern.permute.xlu0 0
        %1885 = vperm.xlu0 %1884, %v1626
        %v1886 = vpop.permute.xlu0 %1885
        %1889 = vset.pattern.permute.xlu0 0
        %1890 = vperm.xlu0 %1889, %v1628
        %v1891 = vpop.permute.xlu0 %1890
        %1894 = vset.pattern.permute.xlu0 0
        %1895 = vperm.xlu0 %1894, %v1630
        %v1896 = vpop.permute.xlu0 %1895
        %1899 = vset.pattern.permute.xlu0 0
        %1900 = vperm.xlu0 %1899, %v1632
        %v1901 = vpop.permute.xlu0 %1900
        %v1903 = vmul.f32 %v1866, %v1855
        %v1904 = vmul.f32 %v1871, %v1856
        %v1905 = vmul.f32 %v1876, %v1857
        %v1906 = vmul.f32 %v1881, %v1858
        %v1907 = vmul.f32 %v1886, %v1859
        %v1908 = vmul.f32 %v1891, %v1860
        %v1909 = vmul.f32 %v1896, %v1861
        %v1910 = vmul.f32 %v1901, %v1862
        %1919 = vrot.lane.b32.xlu0 %v1825, 16
        %v1920 = vpop.permute.xlu0 %1919
        %1921 = vrot.lane.b32.xlu0 %v1828, 16
        %v1922 = vpop.permute.xlu0 %1921
        %1923 = vrot.lane.b32.xlu0 %v1833, 16
        %v1924 = vpop.permute.xlu0 %1923
        %1925 = vrot.lane.b32.xlu0 %v1836, 16
        %v1926 = vpop.permute.xlu0 %1925
        %1927 = vrot.lane.b32.xlu0 %v1841, 16
        %v1928 = vpop.permute.xlu0 %1927
        %1929 = vrot.lane.b32.xlu0 %v1844, 16
        %v1930 = vpop.permute.xlu0 %1929
        %1931 = vrot.lane.b32.xlu0 %v1849, 16
        %v1932 = vpop.permute.xlu0 %1931
        %1933 = vrot.lane.b32.xlu0 %v1852, 16
        %v1934 = vpop.permute.xlu0 %1933
        %v1943 = vadd.f32 %v1903, %v1920
        %v1944 = vadd.f32 %v1904, %v1922
        %v1945 = vadd.f32 %v1905, %v1924
        %v1946 = vadd.f32 %v1906, %v1926
        %v1947 = vadd.f32 %v1907, %v1928
        %v1948 = vadd.f32 %v1908, %v1930
        %v1949 = vadd.f32 %v1909, %v1932
        %v1950 = vadd.f32 %v1910, %v1934
        %vm1951 = vcmask 261248
        %1952 = vst.msk [vmem:[#allocation5] sm:$0xff] %vm1951, %v1943
        %1953 = vst.msk [vmem:[#allocation5 + $0x8] sm:$0xff] %vm1951, %v1944
        %1954 = vst.msk [vmem:[#allocation5 + $0x10] sm:$0xff] %vm1951, %v1945
        %1955 = vst.msk [vmem:[#allocation5 + $0x18] sm:$0xff] %vm1951, %v1946
        %1956 = vst.msk [vmem:[#allocation5 + $0x20] sm:$0xff] %vm1951, %v1947
        %1957 = vst.msk [vmem:[#allocation5 + $0x28] sm:$0xff] %vm1951, %v1948
        %1958 = vst.msk [vmem:[#allocation5 + $0x30] sm:$0xff] %vm1951, %v1949
        %1959 = vst.msk [vmem:[#allocation5 + $0x38] sm:$0xff] %vm1951, %v1950
        %p1960 = scmp.eq.s32.totalorder %s32, 1
        // Predicated region
        $region69: #{tpu_custom_call.1} parent=63 // pred_check
          %p1961 = pneg %p1960
        $region70: #{tpu_custom_call.1} parent=63 // pred_check_branch
          %1963 = sbr.rel (%p1961) target = $region72
        $region71: #{tpu_custom_call.1} parent=63 // pred_region
          %v1964 = vld [vmem:[#allocation4] sm:$0xff]
          %v1965 = vld [vmem:[#allocation4 + $0x8] sm:$0xff]
          %v1966 = vld [vmem:[#allocation4 + $0x10] sm:$0xff]
          %v1967 = vld [vmem:[#allocation4 + $0x18] sm:$0xff]
          %v1968 = vld [vmem:[#allocation4 + $0x20] sm:$0xff]
          %v1969 = vld [vmem:[#allocation4 + $0x28] sm:$0xff]
          %v1970 = vld [vmem:[#allocation4 + $0x30] sm:$0xff]
          %v1971 = vld [vmem:[#allocation4 + $0x38] sm:$0xff]
          %v1972 = vrcp.pop %v1964
          %v1973 = vrcp.pop %v1965
          %v1974 = vrcp.pop %v1966
          %v1975 = vrcp.pop %v1967
          %v1976 = vrcp.pop %v1968
          %v1977 = vrcp.pop %v1969
          %v1978 = vrcp.pop %v1970
          %v1979 = vrcp.pop %v1971
          %v1980 = vld [vmem:[#allocation5] sm:$0xff]
          %v1981 = vld [vmem:[#allocation5 + $0x8] sm:$0xff]
          %v1982 = vld [vmem:[#allocation5 + $0x10] sm:$0xff]
          %v1983 = vld [vmem:[#allocation5 + $0x18] sm:$0xff]
          %v1984 = vld [vmem:[#allocation5 + $0x20] sm:$0xff]
          %v1985 = vld [vmem:[#allocation5 + $0x28] sm:$0xff]
          %v1986 = vld [vmem:[#allocation5 + $0x30] sm:$0xff]
          %v1987 = vld [vmem:[#allocation5 + $0x38] sm:$0xff]
          %1989 = vset.pattern.permute.xlu0 0
          %1990 = vperm.xlu0 %1989, %v1972
          %v1991 = vpop.permute.xlu0 %1990
          %1994 = vset.pattern.permute.xlu0 0
          %1995 = vperm.xlu0 %1994, %v1973
          %v1996 = vpop.permute.xlu0 %1995
          %1999 = vset.pattern.permute.xlu0 0
          %2000 = vperm.xlu0 %1999, %v1974
          %v2001 = vpop.permute.xlu0 %2000
          %2004 = vset.pattern.permute.xlu0 0
          %2005 = vperm.xlu0 %2004, %v1975
          %v2006 = vpop.permute.xlu0 %2005
          %2009 = vset.pattern.permute.xlu0 0
          %2010 = vperm.xlu0 %2009, %v1976
          %v2011 = vpop.permute.xlu0 %2010
          %2014 = vset.pattern.permute.xlu0 0
          %2015 = vperm.xlu0 %2014, %v1977
          %v2016 = vpop.permute.xlu0 %2015
          %2019 = vset.pattern.permute.xlu0 0
          %2020 = vperm.xlu0 %2019, %v1978
          %v2021 = vpop.permute.xlu0 %2020
          %2024 = vset.pattern.permute.xlu0 0
          %2025 = vperm.xlu0 %2024, %v1979
          %v2026 = vpop.permute.xlu0 %2025
          %v2028 = vmul.f32 %v1980, %v1991
          %v2029 = vmul.f32 %v1981, %v1996
          %v2030 = vmul.f32 %v1982, %v2001
          %v2031 = vmul.f32 %v1983, %v2006
          %v2032 = vmul.f32 %v1984, %v2011
          %v2033 = vmul.f32 %v1985, %v2016
          %v2034 = vmul.f32 %v1986, %v2021
          %v2035 = vmul.f32 %v1987, %v2026
          %2036 = vst.msk [vmem:[#allocation5] sm:$0xff] %vm1019, %v2028
          %2037 = vst.msk [vmem:[#allocation5 + $0x8] sm:$0xff] %vm1019, %v2029
          %2038 = vst.msk [vmem:[#allocation5 + $0x10] sm:$0xff] %vm1019, %v2030
          %2039 = vst.msk [vmem:[#allocation5 + $0x18] sm:$0xff] %vm1019, %v2031
          %2040 = vst.msk [vmem:[#allocation5 + $0x20] sm:$0xff] %vm1019, %v2032
          %2041 = vst.msk [vmem:[#allocation5 + $0x28] sm:$0xff] %vm1019, %v2033
          %2042 = vst.msk [vmem:[#allocation5 + $0x30] sm:$0xff] %vm1019, %v2034
          %2043 = vst.msk [vmem:[#allocation5 + $0x38] sm:$0xff] %vm1019, %v2035
          %v2044 = vld [vmem:[%s1697] sm:$0xff]
          %v2045 = vld [vmem:[%s1697 + $0x8] sm:$0xff]
          %v2046 = vld [vmem:[%s1697 + $0x10] sm:$0xff]
          %v2047 = vld [vmem:[%s1697 + $0x18] sm:$0xff]
          %v2048 = vld [vmem:[%s1697 + $0x20] sm:$0xff]
          %v2049 = vld [vmem:[%s1697 + $0x28] sm:$0xff]
          %v2050 = vld [vmem:[%s1697 + $0x30] sm:$0xff]
          %v2051 = vld [vmem:[%s1697 + $0x38] sm:$0xff]
          %v2052 = vrcp.pop %v2044
          %v2053 = vrcp.pop %v2045
          %v2054 = vrcp.pop %v2046
          %v2055 = vrcp.pop %v2047
          %v2056 = vrcp.pop %v2048
          %v2057 = vrcp.pop %v2049
          %v2058 = vrcp.pop %v2050
          %v2059 = vrcp.pop %v2051
          %v2060 = vld [vmem:[#allocation5] sm:$0xff]
          %v2061 = vld [vmem:[#allocation5 + $0x8] sm:$0xff]
          %v2062 = vld [vmem:[#allocation5 + $0x10] sm:$0xff]
          %v2063 = vld [vmem:[#allocation5 + $0x18] sm:$0xff]
          %v2064 = vld [vmem:[#allocation5 + $0x20] sm:$0xff]
          %v2065 = vld [vmem:[#allocation5 + $0x28] sm:$0xff]
          %v2066 = vld [vmem:[#allocation5 + $0x30] sm:$0xff]
          %v2067 = vld [vmem:[#allocation5 + $0x38] sm:$0xff]
          %2069 = vset.pattern.permute.xlu0 0
          %2070 = vperm.xlu0 %2069, %v2052
          %v2071 = vpop.permute.xlu0 %2070
          %2074 = vset.pattern.permute.xlu0 0
          %2075 = vperm.xlu0 %2074, %v2053
          %v2076 = vpop.permute.xlu0 %2075
          %2079 = vset.pattern.permute.xlu0 0
          %2080 = vperm.xlu0 %2079, %v2054
          %v2081 = vpop.permute.xlu0 %2080
          %2084 = vset.pattern.permute.xlu0 0
          %2085 = vperm.xlu0 %2084, %v2055
          %v2086 = vpop.permute.xlu0 %2085
          %2089 = vset.pattern.permute.xlu0 0
          %2090 = vperm.xlu0 %2089, %v2056
          %v2091 = vpop.permute.xlu0 %2090
          %2094 = vset.pattern.permute.xlu0 0
          %2095 = vperm.xlu0 %2094, %v2057
          %v2096 = vpop.permute.xlu0 %2095
          %2099 = vset.pattern.permute.xlu0 0
          %2100 = vperm.xlu0 %2099, %v2058
          %v2101 = vpop.permute.xlu0 %2100
          %2104 = vset.pattern.permute.xlu0 0
          %2105 = vperm.xlu0 %2104, %v2059
          %v2106 = vpop.permute.xlu0 %2105
          %v2108 = vmul.f32 %v2060, %v2071
          %v2109 = vmul.f32 %v2061, %v2076
          %v2110 = vmul.f32 %v2062, %v2081
          %v2111 = vmul.f32 %v2063, %v2086
          %v2112 = vmul.f32 %v2064, %v2091
          %v2113 = vmul.f32 %v2065, %v2096
          %v2114 = vmul.f32 %v2066, %v2101
          %v2115 = vmul.f32 %v2067, %v2106
          %2116 = vst.msk [vmem:[#allocation5] sm:$0xff] %vm1951, %v2108
          %2117 = vst.msk [vmem:[#allocation5 + $0x8] sm:$0xff] %vm1951, %v2109
          %2118 = vst.msk [vmem:[#allocation5 + $0x10] sm:$0xff] %vm1951, %v2110
          %2119 = vst.msk [vmem:[#allocation5 + $0x18] sm:$0xff] %vm1951, %v2111
          %2120 = vst.msk [vmem:[#allocation5 + $0x20] sm:$0xff] %vm1951, %v2112
          %2121 = vst.msk [vmem:[#allocation5 + $0x28] sm:$0xff] %vm1951, %v2113
          %2122 = vst.msk [vmem:[#allocation5 + $0x30] sm:$0xff] %vm1951, %v2114
          %2123 = vst.msk [vmem:[#allocation5 + $0x38] sm:$0xff] %vm1951, %v2115
          %v2124 = vld [vmem:[#allocation5] sm:$0xff]
          %v2125 = vld [vmem:[#allocation5 + $0x8] sm:$0xff]
          %v2126 = vld [vmem:[#allocation5 + $0x10] sm:$0xff]
          %v2127 = vld [vmem:[#allocation5 + $0x18] sm:$0xff]
          %v2128 = vld [vmem:[#allocation5 + $0x20] sm:$0xff]
          %v2129 = vld [vmem:[#allocation5 + $0x28] sm:$0xff]
          %v2130 = vld [vmem:[#allocation5 + $0x30] sm:$0xff]
          %v2131 = vld [vmem:[#allocation5 + $0x38] sm:$0xff]
          %v2132 = vpack.c.bf16 %v2125, %v2124
          %v2133 = vpack.c.bf16 %v2127, %v2126
          %v2134 = vpack.c.bf16 %v2129, %v2128
          %v2135 = vpack.c.bf16 %v2131, %v2130
          %v2136 = vld [vmem:[%s456] sm:$0xf]
          %v2137 = vld [vmem:[%s456 + $0x4] sm:$0xf]
          %v2138 = vld [vmem:[%s456 + $0x8] sm:$0xf]
          %v2139 = vld [vmem:[%s456 + $0xc] sm:$0xf]
          %v2140 = vld [vmem:[%s456 + $0x10] sm:$0xf]
          %v2141 = vld [vmem:[%s456 + $0x14] sm:$0xf]
          %v2142 = vld [vmem:[%s456 + $0x18] sm:$0xf]
          %v2143 = vld [vmem:[%s456 + $0x1c] sm:$0xf]
          %v2144 = vunpack.c.l.bf16 %v2136
          %v2145 = vunpack.c.l.bf16 %v2137
          %v2146 = vunpack.c.l.bf16 %v2138
          %v2147 = vunpack.c.l.bf16 %v2139
          %v2148 = vunpack.c.l.bf16 %v2140
          %v2149 = vunpack.c.l.bf16 %v2141
          %v2150 = vunpack.c.l.bf16 %v2142
          %v2151 = vunpack.c.l.bf16 %v2143
          %v2152 = vmul.f32 %v2144, %v698
          %v2153 = vmul.f32 %v2145, %v698
          %v2154 = vmul.f32 %v2146, %v698
          %v2155 = vmul.f32 %v2147, %v698
          %v2156 = vmul.f32 %v2148, %v698
          %v2157 = vmul.f32 %v2149, %v698
          %v2158 = vmul.f32 %v2150, %v698
          %v2159 = vmul.f32 %v2151, %v698
          %v2160 = vadd.f32 %v2152, %v718
          %v2161 = vadd.f32 %v2153, %v718
          %v2162 = vadd.f32 %v2154, %v718
          %v2163 = vadd.f32 %v2155, %v718
          %v2164 = vadd.f32 %v2156, %v718
          %v2165 = vadd.f32 %v2157, %v718
          %v2166 = vadd.f32 %v2158, %v718
          %v2167 = vadd.f32 %v2159, %v718
          %v2168 = vmax.f32 %v2160, 0.0
          %v2169 = vmax.f32 %v2161, 0.0
          %v2170 = vmax.f32 %v2162, 0.0
          %v2171 = vmax.f32 %v2163, 0.0
          %v2172 = vmax.f32 %v2164, 0.0
          %v2173 = vmax.f32 %v2165, 0.0
          %v2174 = vmax.f32 %v2166, 0.0
          %v2175 = vmax.f32 %v2167, 0.0
          %v2176 = vpack.c.bf16 %v2169, %v2168
          %v2177 = vpack.c.bf16 %v2171, %v2170
          %v2178 = vpack.c.bf16 %v2173, %v2172
          %v2179 = vpack.c.bf16 %v2175, %v2174
          %v2180 = vld [vmem:[%s6] sm:$0x3]
          %v2182 = vsel %vm765, %v2176, 0
          %v2185 = vsel %vm765, %v2177, 0
          %v2188 = vsel %vm765, %v2178, 0
          %v2191 = vsel %vm765, %v2179, 0
          %v2194 = vsel %vm790, %v2180, 0
          %2196 = vmatprep.subr.bf16.mxu0 0
          %2197 = vmatpush1.bf16.msra.mxu0 %v2194
          %2198 = vmatprep.subr.bf16.mxu0 0
          %2199 = vmatpush1.bf16.msra.mxu0 0
          %2200 = vmatprep.subr.bf16.mxu0 0
          %2201 = vmatpush1.bf16.msra.mxu0 0
          %2202 = vmatprep.subr.bf16.mxu0 0
          %2203 = vmatpush1.bf16.msra.mxu0 0
          %2204 = vmatprep.subr.bf16.mxu0 0
          %2205 = vmatpush1.bf16.msra.mxu0 0
          %2206 = vmatprep.subr.bf16.mxu0 0
          %2207 = vmatpush1.bf16.msra.mxu0 0
          %2208 = vmatprep.subr.bf16.mxu0 0
          %2209 = vmatpush1.bf16.msra.mxu0 0
          %2210 = vmatprep.subr.bf16.mxu0 0
          %2211 = vmatpush1.bf16.msra.mxu0 0
          %2212 = vmatprep.subr.bf16.mxu0 0
          %2213 = vmatpush1.bf16.msra.mxu0 0
          %2214 = vmatprep.subr.bf16.mxu0 0
          %2215 = vmatpush1.bf16.msra.mxu0 0
          %2216 = vmatprep.subr.bf16.mxu0 0
          %2217 = vmatpush1.bf16.msra.mxu0 0
          %2218 = vmatprep.subr.bf16.mxu0 0
          %2219 = vmatpush1.bf16.msra.mxu0 0
          %2220 = vmatprep.subr.bf16.mxu0 0
          %2221 = vmatpush1.bf16.msra.mxu0 0
          %2222 = vmatprep.subr.bf16.mxu0 0
          %2223 = vmatpush1.bf16.msra.mxu0 0
          %2224 = vmatprep.subr.bf16.mxu0 0
          %2225 = vmatpush1.bf16.msra.mxu0 0
          %2226 = vmatprep.subr.bf16.mxu0 0
          %2227 = vmatpush1.bf16.msra.mxu0 0
          %2228 = vmatprep.mubr.bf16.mxu0 0
          %2229 = vmatmul.mubr.bf16.gmra.mrb[0].mxu0 %v2182
          %v2230 = vpop.f32.mrb[0].mxu0
          %v2231 = vadd.f32 0.0, %v2230
          %v2232 = vpop.f32.mrb[0].mxu0
          %v2233 = vpop.f32.mrb[0].mxu0
          %v2234 = vadd.f32 0.0, %v2233
          %v2235 = vpop.f32.mrb[0].mxu0
          %2236 = vmatprep.mubr.bf16.mxu0 0
          %2237 = vmatmul.mubr.bf16.gmra.mrb[0].mxu0 %v2185
          %v2238 = vpop.f32.mrb[0].mxu0
          %v2239 = vadd.f32 0.0, %v2238
          %v2240 = vpop.f32.mrb[0].mxu0
          %v2241 = vpop.f32.mrb[0].mxu0
          %v2242 = vadd.f32 0.0, %v2241
          %v2243 = vpop.f32.mrb[0].mxu0
          %2244 = vmatprep.mubr.bf16.mxu0 0
          %2245 = vmatmul.mubr.bf16.gmra.mrb[0].mxu0 %v2188
          %v2246 = vpop.f32.mrb[0].mxu0
          %v2247 = vadd.f32 0.0, %v2246
          %v2248 = vpop.f32.mrb[0].mxu0
          %v2249 = vpop.f32.mrb[0].mxu0
          %v2250 = vadd.f32 0.0, %v2249
          %v2251 = vpop.f32.mrb[0].mxu0
          %2252 = vmatprep.mubr.bf16.mxu0 0
          %2253 = vmatmul.mubr.bf16.gmra.mrb[0].mxu0 %v2191
          %v2254 = vpop.f32.mrb[0].mxu0
          %v2255 = vadd.f32 0.0, %v2254
          %v2256 = vpop.f32.mrb[0].mxu0
          %v2257 = vpop.f32.mrb[0].mxu0
          %v2258 = vadd.f32 0.0, %v2257
          %v2259 = vpop.f32.mrb[0].mxu0
          %2260 = vdwg.mxu0
          %v2261 = vld [vmem:[%s7] sm:$0xf]
          %v2262 = vld [vmem:[%s7 + $0x4] sm:$0xf]
          %v2263 = vld [vmem:[%s7 + $0x8] sm:$0xf]
          %v2264 = vld [vmem:[%s7 + $0xc] sm:$0xf]
          %v2265 = vld [vmem:[%s10] sm:$0x1]
          %v2267 = vlaneseq
          %v2268 = vshrl.u32 %v2267, 7
          %v2269 = vsub.s32 0, %v2268
          %v2270 = vrot.slane %v2265, %v2269
          %v2276 = vunpack.c.l.b16 %v2261
          %v2277 = vunpack.c.l.b16 %v2262
          %v2278 = vunpack.c.l.b16 %v2263
          %v2279 = vunpack.c.l.b16 %v2264
          %v2280 = vpack.c.b16 %v2277, %v2276
          %v2281 = vpack.c.b16 %v2279, %v2278
          %vm2284 = vcmask 261120
          %v2286 = vsel %vm2284, %v2132, 0
          %v2289 = vsel %vm2284, %v2133, 0
          %v2292 = vsel %vm2284, %v2134, 0
          %v2295 = vsel %vm2284, %v2135, 0
          %2297 = vmatprep.subr.bf16.mxu0 0
          %2298 = vmatpush1.bf16.msra.mxu0 %v2280
          %2299 = vmatprep.subr.bf16.mxu0 0
          %2300 = vmatpush1.bf16.msra.mxu0 %v2281
          %2301 = vmatprep.subr.bf16.mxu0 0
          %2302 = vmatpush1.bf16.msra.mxu0 0
          %2303 = vmatprep.subr.bf16.mxu0 0
          %2304 = vmatpush1.bf16.msra.mxu0 0
          %2305 = vmatprep.subr.bf16.mxu0 0
          %2306 = vmatpush1.bf16.msra.mxu0 0
          %2307 = vmatprep.subr.bf16.mxu0 0
          %2308 = vmatpush1.bf16.msra.mxu0 0
          %2309 = vmatprep.subr.bf16.mxu0 0
          %2310 = vmatpush1.bf16.msra.mxu0 0
          %2311 = vmatprep.subr.bf16.mxu0 0
          %2312 = vmatpush1.bf16.msra.mxu0 0
          %2313 = vmatprep.subr.bf16.mxu0 0
          %2314 = vmatpush1.bf16.msra.mxu0 0
          %2315 = vmatprep.subr.bf16.mxu0 0
          %2316 = vmatpush1.bf16.msra.mxu0 0
          %2317 = vmatprep.subr.bf16.mxu0 0
          %2318 = vmatpush1.bf16.msra.mxu0 0
          %2319 = vmatprep.subr.bf16.mxu0 0
          %2320 = vmatpush1.bf16.msra.mxu0 0
          %2321 = vmatprep.subr.bf16.mxu0 0
          %2322 = vmatpush1.bf16.msra.mxu0 0
          %2323 = vmatprep.subr.bf16.mxu0 0
          %2324 = vmatpush1.bf16.msra.mxu0 0
          %2325 = vmatprep.subr.bf16.mxu0 0
          %2326 = vmatpush1.bf16.msra.mxu0 0
          %2327 = vmatprep.subr.bf16.mxu0 0
          %2328 = vmatpush1.bf16.msra.mxu0 0
          %2329 = vmatprep.mubr.bf16.mxu0 0
          %2330 = vmatmul.mubr.bf16.gmra.mrb[0].mxu0 %v2286
          %v2331 = vpop.f32.mrb[0].mxu0
          %v2332 = vadd.f32 %v2270, %v2331
          %v2333 = vpop.f32.mrb[0].mxu0
          %v2334 = vpop.f32.mrb[0].mxu0
          %v2335 = vadd.f32 %v2270, %v2334
          %v2336 = vpop.f32.mrb[0].mxu0
          %2337 = vmatprep.mubr.bf16.mxu0 0
          %2338 = vmatmul.mubr.bf16.gmra.mrb[0].mxu0 %v2289
          %v2339 = vpop.f32.mrb[0].mxu0
          %v2340 = vadd.f32 %v2270, %v2339
          %v2341 = vpop.f32.mrb[0].mxu0
          %v2342 = vpop.f32.mrb[0].mxu0
          %v2343 = vadd.f32 %v2270, %v2342
          %v2344 = vpop.f32.mrb[0].mxu0
          %2345 = vmatprep.mubr.bf16.mxu0 0
          %2346 = vmatmul.mubr.bf16.gmra.mrb[0].mxu0 %v2292
          %v2347 = vpop.f32.mrb[0].mxu0
          %v2348 = vadd.f32 %v2270, %v2347
          %v2349 = vpop.f32.mrb[0].mxu0
          %v2350 = vpop.f32.mrb[0].mxu0
          %v2351 = vadd.f32 %v2270, %v2350
          %v2352 = vpop.f32.mrb[0].mxu0
          %2353 = vmatprep.mubr.bf16.mxu0 0
          %2354 = vmatmul.mubr.bf16.gmra.mrb[0].mxu0 %v2295
          %v2355 = vpop.f32.mrb[0].mxu0
          %v2356 = vadd.f32 %v2270, %v2355
          %v2357 = vpop.f32.mrb[0].mxu0
          %v2358 = vpop.f32.mrb[0].mxu0
          %v2359 = vadd.f32 %v2270, %v2358
          %v2360 = vpop.f32.mrb[0].mxu0
          %2361 = vdwg.mxu0
          %v2362 = vadd.f32 %v2332, %v2231
          %v2363 = vadd.f32 %v2335, %v2234
          %v2364 = vadd.f32 %v2340, %v2239
          %v2365 = vadd.f32 %v2343, %v2242
          %v2366 = vadd.f32 %v2348, %v2247
          %v2367 = vadd.f32 %v2351, %v2250
          %v2368 = vadd.f32 %v2356, %v2255
          %v2369 = vadd.f32 %v2359, %v2258
          %v2370 = vpack.c.bf16 %v2363, %v2362
          %v2371 = vpack.c.bf16 %v2365, %v2364
          %v2372 = vpack.c.bf16 %v2367, %v2366
          %v2373 = vpack.c.bf16 %v2369, %v2368
          %v2378 = vunpack.c.l.b16 %v2370
          %v2379 = vunpack.c.h.b16 %v2370
          %v2380 = vunpack.c.l.b16 %v2371
          %v2381 = vunpack.c.h.b16 %v2371
          %v2382 = vunpack.c.l.b16 %v2372
          %v2383 = vunpack.c.h.b16 %v2372
          %v2384 = vunpack.c.l.b16 %v2373
          %v2385 = vunpack.c.h.b16 %v2373
          %v2386 = vpack.c.b16 %v2378, %v2378
          %v2387 = vpack.c.b16 %v2379, %v2379
          %v2388 = vpack.c.b16 %v2380, %v2380
          %v2389 = vpack.c.b16 %v2381, %v2381
          %v2390 = vpack.c.b16 %v2382, %v2382
          %v2391 = vpack.c.b16 %v2383, %v2383
          %v2392 = vpack.c.b16 %v2384, %v2384
          %v2393 = vpack.c.b16 %v2385, %v2385
          %2402 = vst [vmem:[%s437] sm:$0xf] %v2386
          %2403 = vst [vmem:[%s437 + $0x4] sm:$0xf] %v2387
          %2404 = vst [vmem:[%s437 + $0x8] sm:$0xf] %v2388
          %2405 = vst [vmem:[%s437 + $0xc] sm:$0xf] %v2389
          %2406 = vst [vmem:[%s437 + $0x10] sm:$0xf] %v2390
          %2407 = vst [vmem:[%s437 + $0x14] sm:$0xf] %v2391
          %2408 = vst [vmem:[%s437 + $0x18] sm:$0xf] %v2392
          %2409 = vst [vmem:[%s437 + $0x1c] sm:$0xf] %v2393
        $region72: #{tpu_custom_call.1} parent=63 // pred_fallthru
          _
        %s2410 = sand.u32 %s299, 1
        %s2411 = scalar_lea.sflag [#allocation7], %s2410
        %s2412 = sand.u32 %s299, 1
        %s2413 = smul.addr %s2412, 32
        %s2414 = scalar_lea.vmem [#allocation6], %s2413
        // Predicated region
        $region73: #{tpu_custom_call.1} parent=63 // pred_check
          %p2415 = pneg %p309
        $region74: #{tpu_custom_call.1} parent=63 // pred_check_branch
          %2417 = sbr.rel (%p2415) target = $region76
        $region75: #{tpu_custom_call.1} parent=63 // pred_region
          %s2418 = smul.u32 8, %s31
          %s2420 = ssub.s32 512, 512
          %2421 = vsyncadd %s2411, %s2420
          %s2422 = smul.addr %s30, 8
          %s2423 = sadd.s32 %s2418, %s2422
          %s2424 = smul.addr %s2423, 64
          %s2425 = scalar_lea.hbm %s11, %s2424
          %s2426 = sshll.u32 %s2414, 4
          %s2427 = int_to_ptr.vmem [resolvable:$true] %s2426
          %2432 = dma.vmem_to_hbm [thread:$0]  %s2427, 512, %s2425, %s2411, 64, 64, 4
        $region76: #{tpu_custom_call.1} parent=63 // pred_fallthru
          _
      $region64: #{tpu_custom_call.1} parent=5 // pred_fallthru
        _
      %p2433 = scmp.le.s32.totalorder 2, %s20
      // Predicated region
      $region77: #{tpu_custom_call.1} parent=5 // pred_check
        %p2434 = pneg %p2433
      $region78: #{tpu_custom_call.1} parent=5 // pred_check_branch
        %2436 = sbr.rel (%p2434) target = $region80
      $region79: #{tpu_custom_call.1} parent=5 // pred_region
        %s2437 = ssub.s32 %s20, 2
        // Predicated region
        $region81: #{tpu_custom_call.1} parent=79 // pred_check
          %p2438 = pneg %p315
        $region82: #{tpu_custom_call.1} parent=79 // pred_check_branch
          %2440 = sbr.rel (%p2438) target = $region84
        $region83: #{tpu_custom_call.1} parent=79 // pred_region
          %s2441 = sand.u32 %s300, 1
          %s2442 = scalar_lea.sflag [#allocation7], %s2441
          %s2443 = sand.u32 %s300, 1
          %s2444 = smul.addr %s2443, 32
          %s2445 = scalar_lea.vmem [#allocation6], %s2444
          %2446 = dma.done %s2442, 512
        $region84: #{tpu_custom_call.1} parent=79 // pred_fallthru
          _
      $region80: #{tpu_custom_call.1} parent=5 // pred_fallthru
        _
    $region6: #{tpu_custom_call.1} parent=1 // loop_footer
      %s24 = sadd.s32 1, %s20
    $region7: #{tpu_custom_call.1} parent=1 // loop_footer_branch
      %19 = sbr.rel target = $region3
    $region8: #{tpu_custom_call.1} parent=1 // loop_exit
      _
    %2447 = vsyncpa [#allocation7], 1
    %s2448 = scalar_lea.sflag [#allocation7], 1
    %2449 = vsyncpa %s2448, 1

</llo_original>
